<compile_context>
chip_gen: v6e
topology: v6e:2x2x1
jax: 0.10.0
libtpu: 0.0.40
codegen_flags: <defaults>
</compile_context>

<pallas_src>
import numpy as np
import jax
import jax.numpy as jnp
from jax.experimental import pallas as pl
from jax.experimental.pallas import tpu as pltpu

# ----- model hyperparameters (small, consistent with the module's forward) -----
# TODO(synk): the original script's constants (input_dim=2, time_dim=16) make `x + t_emb`
# a broadcast error in PyTorch; the forward is only valid when time_dim == input_dim,
# so we keep the small consistent configuration used previously.
INPUT_DIM = 4
TIME_DIM = 4          # must equal INPUT_DIM for the broadcast in forward()
BASE_CH = 8
SEQ_LEN = 16
BATCH = 2

_HI = jax.lax.Precision.HIGHEST   # used only by the pure-JAX reference

# (name, kind, Cin, Cout, K, stride, padding, Lin, Lout, relu) for the five conv layers.
_LAYERS = (
    ('enc1', 'conv',  INPUT_DIM,    BASE_CH,     3, 1, 1, SEQ_LEN,      SEQ_LEN,      True),
    ('enc2', 'conv',  BASE_CH,      2 * BASE_CH, 3, 2, 1, SEQ_LEN,      SEQ_LEN // 2, True),
    ('bott', 'conv',  2 * BASE_CH,  2 * BASE_CH, 3, 1, 1, SEQ_LEN // 2, SEQ_LEN // 2, True),
    ('dec1', 'convT', 2 * BASE_CH,  BASE_CH,     4, 2, 1, SEQ_LEN // 2, SEQ_LEN,      True),
    ('dec2', 'conv',  BASE_CH,      INPUT_DIM,   3, 1, 1, SEQ_LEN,      SEQ_LEN,      False),
)


# ---------------------------- static const-slab layout ----------------------------

def _round8(n):
    return ((n + 7) // 8) * 8


def _build_const_layout():
    """Static (row0, rows, cols) for every constant inside the single VMEM slab.
    Row starts are 8-aligned (sublane tile) so in-kernel carving is layout-friendly."""
    layout = {}
    r = 0

    def add(name, rows, cols):
        nonlocal r
        layout[name] = (r, rows, cols)
        r += _round8(rows)

    add('te', TIME_DIM, TIME_DIM + 3)                       # [W2 | w1 | b1 | b2]
    for name, kind, cin, cout, K, stride, pad, lin, lout, _ in _LAYERS:
        add(name + '_w', cout, K * cin + 1)                 # packed weight + bias column
        add(name + '_s', BATCH * lin, K * BATCH * lout)     # one-hot gather matrix
    return layout, r


_CONST_LAYOUT, _CONST_ROWS = _build_const_layout()
_CONST_COLS = ((max(c for _, _, c in _CONST_LAYOUT.values()) + 127) // 128) * 128


# ---------------------------- fused Pallas kernel ----------------------------

def _cview(c_ref, name):
    """Static carve of one constant out of the single const slab (zero runtime cost indexing)."""
    r0, rows, cols = _CONST_LAYOUT[name]
    return c_ref[r0:r0 + rows, 0:cols]


def _conv_layer(h, w, s, *, K, relu):
    """One Conv1d / ConvTranspose1d layer with batch packed into the lane axis.

    h: (Cin, B*Lin) activations.
    s: (B*Lin, K*B*Lout) host-built one-hot gather matrix (encodes zero padding, stride,
       transposed-conv upsampling and the batch boundary; all-zero columns == zero padding).
    w: (Cout, K*Cin + 1) packed weight; column k*Cin+ci is the tap-k weight, last column bias.
    """
    cin = h.shape[0]
    cout = w.shape[0]
    n_out = s.shape[1] // K
    # One lane-dense im2col matmul ...
    g = jnp.dot(h, s, preferred_element_type=jnp.float32)            # (Cin, K*B*Lout)
    # ... then K *independent* tap matmuls (all depend only on g), tree-summed so no dot
    # issue is gated on the VPU add of the previous tap.
    taps = [jnp.dot(w[:, k * cin:(k + 1) * cin],
                    g[:, k * n_out:(k + 1) * n_out],
                    preferred_element_type=jnp.float32) for k in range(K)]
    while len(taps) > 1:
        nxt = [taps[i] + taps[i + 1] for i in range(0, len(taps) - 1, 2)]
        if len(taps) % 2:
            nxt.append(taps[-1])
        taps = nxt
    y = jnp.broadcast_to(w[:, K * cin:K * cin + 1], (cout, n_out)) + taps[0]
    return jnp.maximum(y, 0.0) if relu else y


def unet_fused_kernel(xt_ref, c_ref, o_ref):
    D = TIME_DIM

    # xt_ref packs [x batch-packed (Cin, B*L) ; timestep expanded per lane (1, B*L)]
    x = xt_ref[0:INPUT_DIM, :]
    t = xt_ref[INPUT_DIM:INPUT_DIM + 1, :]                  # (1, B*L)

    # ---- time-embedding MLP: Linear(1,D) -> ReLU -> Linear(D,D), on the VPU ----
    te = _cview(c_ref, 'te')                                # (D, D+3) = [W2 | w1 | b1 | b2]
    w2 = te[:, 0:D]
    w1 = te[:, D:D + 1]
    b1 = te[:, D + 1:D + 2]
    b2 = te[:, D + 2:D + 3]
    h1 = jnp.maximum(w1 * t + b1, 0.0)                      # (D, B*L)
    temb = jnp.broadcast_to(b2, h1.shape)
    for j in range(D):                                      # tiny DxD matvec, unrolled on VPU
        temb = temb + w2[:, j:j + 1] * h1[j:j + 1, :]

    # ---- x + t_emb, then encoder / bottleneck / decoder, activations never leave vregs ----
    h = x + temb                                            # (Cin, B*L)
    for name, kind, cin, cout, K, stride, pad, lin, lout, relu in _LAYERS:
        h = _conv_layer(h, _cview(c_ref, name + '_w'), _cview(c_ref, name + '_s'),
                        K=K, relu=relu)

    # ---- single lane-dense store; unpack to (B, C, L) happens in the wrapper ----
    o_ref[...] = h


# ---------------------------- host-side constant packing ----------------------------

def _gather_matrix(kind, K, stride, pad, lin, lout, batch):
    """(batch*lin, K*batch*lout) one-hot matrix encoding padding / stride / transposed-conv
    upsampling / batch boundary for one layer.  Zero columns implement zero padding."""
    s = np.zeros((batch * lin, K * batch * lout), np.float32)
    for k in range(K):
        for b in range(batch):
            for o in range(lout):
                col = k * batch * lout + b * lout + o
                if kind == 'conv':            # y[o] += w[k] * x[o*stride + k - pad]
                    j = o * stride + k - pad
                    if 0 <= j < lin:
                        s[b * lin + j, col] = 1.0
                else:                          # ConvTranspose: y[i*stride + k - pad] += w[k] * x[i]
                    num = o + pad - k
                    if num % stride == 0:
                        i = num // stride
                        if 0 <= i < lin:
                            s[b * lin + i, col] = 1.0
    return s


def _packed_weight(kind, w, b):
    """(Cout, K*Cin + 1): column k*Cin+ci holds the tap-k weight, last column the bias."""
    w = np.asarray(w, np.float32)
    if kind == 'conv':                         # PyTorch Conv1d weight: (Cout, Cin, K)
        wm = np.transpose(w, (0, 2, 1))        # (Cout, K, Cin)
    else:                                      # PyTorch ConvTranspose1d weight: (Cin, Cout, K)
        wm = np.transpose(w, (1, 2, 0))        # (Cout, K, Cin)
    wm = wm.reshape(wm.shape[0], -1)
    return np.concatenate([wm, np.asarray(b, np.float32)[:, None]], axis=1)


def prepare_kernel_consts(params, batch):
    """One-time numpy packing of everything into ONE const slab (outside any hot path)."""
    assert batch == BATCH, "gather matrices are generated for the module-level BATCH"
    p = {k: np.asarray(v, np.float32) for k, v in params.items()}
    slab = np.zeros((_CONST_ROWS, _CONST_COLS), np.float32)

    def put(name, arr):
        r0, rows, cols = _CONST_LAYOUT[name]
        assert arr.shape == (rows, cols), (name, arr.shape, (rows, cols))
        slab[r0:r0 + rows, 0:cols] = arr

    te_pack = np.concatenate(                  # (D, D+3): [W2 | w1 | b1 | b2]
        [p['te_w2'], p['te_w1'], p['te_b1'][:, None], p['te_b2'][:, None]], axis=1)
    put('te', te_pack)
    for name, kind, cin, cout, K, stride, pad, lin, lout, _ in _LAYERS:
        put(name + '_w', _packed_weight(kind, p[name + '_w'], p[name + '_b']))
        put(name + '_s', _gather_matrix(kind, K, stride, pad, lin, lout, batch))
    return jnp.asarray(slab)


# ---------------------------- Pallas wrapper ----------------------------

def unet_forward(x, t, const_slab):
    B, cin, L = x.shape
    N = B * L
    # Layout plumbing only (XLA side): batch-pack x into the lane axis and expand t per lane.
    x_packed = jnp.transpose(x.astype(jnp.float32), (1, 0, 2)).reshape(cin, N)       # (Cin, B*L)
    t_exp = jnp.repeat(t.astype(jnp.float32).reshape(B, 1), L, axis=1).reshape(1, N)  # (1, B*L)
    xt = jnp.concatenate([x_packed, t_exp], axis=0)                                    # (Cin+1, B*L)

    out_packed = pl.pallas_call(
        unet_fused_kernel,
        out_shape=jax.ShapeDtypeStruct((cin, N), jnp.float32),
        in_specs=[pl.BlockSpec(memory_space=pltpu.MemorySpace.VMEM),
                  pl.BlockSpec(memory_space=pltpu.MemorySpace.VMEM)],
        out_specs=pl.BlockSpec(memory_space=pltpu.MemorySpace.VMEM),
    )(xt, const_slab)
    # Unpack the lane-dense (C, B*L) slab back to the PyTorch NCL layout.
    return jnp.transpose(out_packed.reshape(cin, B, L), (1, 0, 2))


# ---------------------------- pure-JAX reference ----------------------------

def _conv1d_ref(x, w, b, stride, padding):
    out = jax.lax.conv_general_dilated(
        x, w, window_strides=(stride,), padding=[(padding, padding)],
        dimension_numbers=('NCH', 'OIH', 'NCH'), precision=_HI)
    return out + b[None, :, None]


def _conv_transpose1d_ref(x, w, b, stride, padding):
    K = w.shape[-1]
    w_eq = jnp.flip(jnp.transpose(w, (1, 0, 2)), axis=-1)
    out = jax.lax.conv_general_dilated(
        x, w_eq, window_strides=(1,), padding=[(K - 1 - padding, K - 1 - padding)],
        lhs_dilation=(stride,), dimension_numbers=('NCH', 'OIH', 'NCH'), precision=_HI)
    return out + b[None, :, None]


def ref_forward(x, t, p):
    h = jnp.maximum(t[:, None] @ p['te_w1'].T + p['te_b1'][None, :], 0.0)
    temb = h @ p['te_w2'].T + p['te_b2'][None, :]
    h = x + temb[:, :, None]
    h = jnp.maximum(_conv1d_ref(h, p['enc1_w'], p['enc1_b'], 1, 1), 0.0)
    h = jnp.maximum(_conv1d_ref(h, p['enc2_w'], p['enc2_b'], 2, 1), 0.0)
    h = jnp.maximum(_conv1d_ref(h, p['bott_w'], p['bott_b'], 1, 1), 0.0)
    h = jnp.maximum(_conv_transpose1d_ref(h, p['dec1_w'], p['dec1_b'], 2, 1), 0.0)
    h = _conv1d_ref(h, p['dec2_w'], p['dec2_b'], 1, 1)
    return h


# ---------------------------- parameter init ----------------------------

def init_params(key):
    shapes = {
        'te_w1': (TIME_DIM, 1),                       'te_b1': (TIME_DIM,),
        'te_w2': (TIME_DIM, TIME_DIM),                'te_b2': (TIME_DIM,),
        'enc1_w': (BASE_CH, INPUT_DIM, 3),            'enc1_b': (BASE_CH,),
        'enc2_w': (2 * BASE_CH, BASE_CH, 3),          'enc2_b': (2 * BASE_CH,),
        'bott_w': (2 * BASE_CH, 2 * BASE_CH, 3),      'bott_b': (2 * BASE_CH,),
        'dec1_w': (2 * BASE_CH, BASE_CH, 4),          'dec1_b': (BASE_CH,),   # ConvTranspose1d layout (Cin, Cout, K)
        'dec2_w': (INPUT_DIM, BASE_CH, 3),            'dec2_b': (INPUT_DIM,),
    }
    keys = jax.random.split(key, len(shapes))
    params = {}
    for k, (name, shp) in zip(keys, sorted(shapes.items())):
        params[name] = 0.2 * jax.random.normal(k, shp, jnp.float32)
    return params


# ---------------------------- main ----------------------------

if __name__ == "__main__":
    key = jax.random.PRNGKey(0)
    kx, kt, kp = jax.random.split(key, 3)
    x = jax.random.normal(kx, (BATCH, INPUT_DIM, SEQ_LEN), jnp.float32)
    t = jax.random.uniform(kt, (BATCH,), jnp.float32)
    params = init_params(kp)
    const_slab = prepare_kernel_consts(params, BATCH)

    out = jax.block_until_ready(unet_forward(x, t, const_slab))
    ref = jax.block_until_ready(ref_forward(x, t, params))

    assert out.shape == (BATCH, INPUT_DIM, SEQ_LEN), out.shape
    # Tolerance covers default (bf16-pass) MXU precision in the kernel vs. HIGHEST f32 reference.
    np.testing.assert_allclose(np.asarray(out), np.asarray(ref), atol=2e-2, rtol=2e-2)
    print("KERNEL_OK")
</pallas_src>

<mosaic_0001>
module attributes {stable_mosaic.version = 11 : i64} {
  func.func @unet_fused_kernel(%arg0: memref<5x32xf32, #tpu.memory_space<vmem>>, %arg1: memref<192x128xf32, #tpu.memory_space<vmem>>, %arg2: memref<4x32xf32, #tpu.memory_space<vmem>>) attributes {dimension_semantics = [], scalar_prefetch = 0 : i64, scratch_operands = 0 : i64, tpu.core_type = #tpu.core_type<tc>} {
    %c0 = arith.constant 0 : index
    %c0_0 = arith.constant 0 : index
    %0 = vector.load %arg0[%c0, %c0_0] : memref<5x32xf32, #tpu.memory_space<vmem>>, vector<4x32xf32>
    %c4 = arith.constant 4 : index
    %c0_1 = arith.constant 0 : index
    %1 = vector.load %arg0[%c4, %c0_1] : memref<5x32xf32, #tpu.memory_space<vmem>>, vector<1x32xf32>
    %c0_2 = arith.constant 0 : index
    %c0_3 = arith.constant 0 : index
    %2 = vector.load %arg1[%c0_2, %c0_3] : memref<192x128xf32, #tpu.memory_space<vmem>>, vector<4x7xf32>
    %3 = vector.extract_strided_slice %2 {offsets = [0, 0], sizes = [4, 4], strides = [1, 1]} : vector<4x7xf32> to vector<4x4xf32>
    %4 = vector.extract_strided_slice %2 {offsets = [0, 4], sizes = [4, 1], strides = [1, 1]} : vector<4x7xf32> to vector<4x1xf32>
    %5 = vector.extract_strided_slice %2 {offsets = [0, 5], sizes = [4, 1], strides = [1, 1]} : vector<4x7xf32> to vector<4x1xf32>
    %6 = vector.extract_strided_slice %2 {offsets = [0, 6], sizes = [4, 1], strides = [1, 1]} : vector<4x7xf32> to vector<4x1xf32>
    %7 = vector.broadcast %4 : vector<4x1xf32> to vector<4x32xf32>
    %8 = vector.broadcast %1 : vector<1x32xf32> to vector<4x32xf32>
    %9 = arith.mulf %7, %8 : vector<4x32xf32>
    %10 = vector.broadcast %5 : vector<4x1xf32> to vector<4x32xf32>
    %11 = arith.addf %9, %10 : vector<4x32xf32>
    %cst = arith.constant 0.000000e+00 : f32
    %12 = vector.broadcast %cst : f32 to vector<4x32xf32>
    %13 = arith.maximumf %11, %12 : vector<4x32xf32>
    %14 = vector.shape_cast %6 : vector<4x1xf32> to vector<4x1xf32>
    %15 = vector.broadcast %14 : vector<4x1xf32> to vector<4x32xf32>
    %16 = vector.extract_strided_slice %3 {offsets = [0, 0], sizes = [4, 1], strides = [1, 1]} : vector<4x4xf32> to vector<4x1xf32>
    %17 = vector.extract_strided_slice %13 {offsets = [0, 0], sizes = [1, 32], strides = [1, 1]} : vector<4x32xf32> to vector<1x32xf32>
    %18 = vector.broadcast %16 : vector<4x1xf32> to vector<4x32xf32>
    %19 = vector.broadcast %17 : vector<1x32xf32> to vector<4x32xf32>
    %20 = arith.mulf %18, %19 : vector<4x32xf32>
    %21 = arith.addf %15, %20 : vector<4x32xf32>
    %22 = vector.extract_strided_slice %3 {offsets = [0, 1], sizes = [4, 1], strides = [1, 1]} : vector<4x4xf32> to vector<4x1xf32>
    %23 = vector.extract_strided_slice %13 {offsets = [1, 0], sizes = [1, 32], strides = [1, 1]} : vector<4x32xf32> to vector<1x32xf32>
    %24 = vector.broadcast %22 : vector<4x1xf32> to vector<4x32xf32>
    %25 = vector.broadcast %23 : vector<1x32xf32> to vector<4x32xf32>
    %26 = arith.mulf %24, %25 : vector<4x32xf32>
    %27 = arith.addf %21, %26 : vector<4x32xf32>
    %28 = vector.extract_strided_slice %3 {offsets = [0, 2], sizes = [4, 1], strides = [1, 1]} : vector<4x4xf32> to vector<4x1xf32>
    %29 = vector.extract_strided_slice %13 {offsets = [2, 0], sizes = [1, 32], strides = [1, 1]} : vector<4x32xf32> to vector<1x32xf32>
    %30 = vector.broadcast %28 : vector<4x1xf32> to vector<4x32xf32>
    %31 = vector.broadcast %29 : vector<1x32xf32> to vector<4x32xf32>
    %32 = arith.mulf %30, %31 : vector<4x32xf32>
    %33 = arith.addf %27, %32 : vector<4x32xf32>
    %34 = vector.extract_strided_slice %3 {offsets = [0, 3], sizes = [4, 1], strides = [1, 1]} : vector<4x4xf32> to vector<4x1xf32>
    %35 = vector.extract_strided_slice %13 {offsets = [3, 0], sizes = [1, 32], strides = [1, 1]} : vector<4x32xf32> to vector<1x32xf32>
    %36 = vector.broadcast %34 : vector<4x1xf32> to vector<4x32xf32>
    %37 = vector.broadcast %35 : vector<1x32xf32> to vector<4x32xf32>
    %38 = arith.mulf %36, %37 : vector<4x32xf32>
    %39 = arith.addf %33, %38 : vector<4x32xf32>
    %40 = arith.addf %0, %39 : vector<4x32xf32>
    %c8 = arith.constant 8 : index
    %c0_4 = arith.constant 0 : index
    %41 = vector.load %arg1[%c8, %c0_4] : memref<192x128xf32, #tpu.memory_space<vmem>>, vector<8x13xf32>
    %c16 = arith.constant 16 : index
    %c0_5 = arith.constant 0 : index
    %42 = vector.load %arg1[%c16, %c0_5] : memref<192x128xf32, #tpu.memory_space<vmem>>, vector<32x96xf32>
    %cst_6 = arith.constant dense<0.000000e+00> : vector<4x96xf32>
    %43 = tpu.matmul %40, %42, %cst_6 {dimension_numbers = #tpu.dot_dimension_numbers<[1], [0], [0], [1], [0, 0, 1, 1], [], []>} : vector<4x32xf32>, vector<32x96xf32>, vector<4x96xf32> -> vector<4x96xf32>
    %44 = vector.extract_strided_slice %41 {offsets = [0, 0], sizes = [8, 4], strides = [1, 1]} : vector<8x13xf32> to vector<8x4xf32>
    %45 = vector.extract_strided_slice %43 {offsets = [0, 0], sizes = [4, 32], strides = [1, 1]} : vector<4x96xf32> to vector<4x32xf32>
    %cst_7 = arith.constant dense<0.000000e+00> : vector<8x32xf32>
    %46 = tpu.matmul %44, %45, %cst_7 {dimension_numbers = #tpu.dot_dimension_numbers<[1], [0], [0], [1], [0, 0, 1, 1], [], []>} : vector<8x4xf32>, vector<4x32xf32>, vector<8x32xf32> -> vector<8x32xf32>
    %47 = vector.extract_strided_slice %41 {offsets = [0, 4], sizes = [8, 4], strides = [1, 1]} : vector<8x13xf32> to vector<8x4xf32>
    %48 = vector.extract_strided_slice %43 {offsets = [0, 32], sizes = [4, 32], strides = [1, 1]} : vector<4x96xf32> to vector<4x32xf32>
    %cst_8 = arith.constant dense<0.000000e+00> : vector<8x32xf32>
    %49 = tpu.matmul %47, %48, %cst_8 {dimension_numbers = #tpu.dot_dimension_numbers<[1], [0], [0], [1], [0, 0, 1, 1], [], []>} : vector<8x4xf32>, vector<4x32xf32>, vector<8x32xf32> -> vector<8x32xf32>
    %50 = vector.extract_strided_slice %41 {offsets = [0, 8], sizes = [8, 4], strides = [1, 1]} : vector<8x13xf32> to vector<8x4xf32>
    %51 = vector.extract_strided_slice %43 {offsets = [0, 64], sizes = [4, 32], strides = [1, 1]} : vector<4x96xf32> to vector<4x32xf32>
    %cst_9 = arith.constant dense<0.000000e+00> : vector<8x32xf32>
    %52 = tpu.matmul %50, %51, %cst_9 {dimension_numbers = #tpu.dot_dimension_numbers<[1], [0], [0], [1], [0, 0, 1, 1], [], []>} : vector<8x4xf32>, vector<4x32xf32>, vector<8x32xf32> -> vector<8x32xf32>
    %53 = arith.addf %46, %49 : vector<8x32xf32>
    %54 = arith.addf %53, %52 : vector<8x32xf32>
    %55 = vector.extract_strided_slice %41 {offsets = [0, 12], sizes = [8, 1], strides = [1, 1]} : vector<8x13xf32> to vector<8x1xf32>
    %56 = vector.shape_cast %55 : vector<8x1xf32> to vector<8x1xf32>
    %57 = vector.broadcast %56 : vector<8x1xf32> to vector<8x32xf32>
    %58 = arith.addf %57, %54 : vector<8x32xf32>
    %cst_10 = arith.constant 0.000000e+00 : f32
    %59 = vector.broadcast %cst_10 : f32 to vector<8x32xf32>
    %60 = arith.maximumf %58, %59 : vector<8x32xf32>
    %c48 = arith.constant 48 : index
    %c0_11 = arith.constant 0 : index
    %61 = vector.load %arg1[%c48, %c0_11] : memref<192x128xf32, #tpu.memory_space<vmem>>, vector<16x25xf32>
    %c64 = arith.constant 64 : index
    %c0_12 = arith.constant 0 : index
    %62 = vector.load %arg1[%c64, %c0_12] : memref<192x128xf32, #tpu.memory_space<vmem>>, vector<32x48xf32>
    %cst_13 = arith.constant dense<0.000000e+00> : vector<8x48xf32>
    %63 = tpu.matmul %60, %62, %cst_13 {dimension_numbers = #tpu.dot_dimension_numbers<[1], [0], [0], [1], [0, 0, 1, 1], [], []>} : vector<8x32xf32>, vector<32x48xf32>, vector<8x48xf32> -> vector<8x48xf32>
    %64 = vector.extract_strided_slice %61 {offsets = [0, 0], sizes = [16, 8], strides = [1, 1]} : vector<16x25xf32> to vector<16x8xf32>
    %65 = vector.extract_strided_slice %63 {offsets = [0, 0], sizes = [8, 16], strides = [1, 1]} : vector<8x48xf32> to vector<8x16xf32>
    %cst_14 = arith.constant dense<0.000000e+00> : vector<16x16xf32>
    %66 = tpu.matmul %64, %65, %cst_14 {dimension_numbers = #tpu.dot_dimension_numbers<[1], [0], [0], [1], [0, 0, 1, 1], [], []>} : vector<16x8xf32>, vector<8x16xf32>, vector<16x16xf32> -> vector<16x16xf32>
    %67 = vector.extract_strided_slice %61 {offsets = [0, 8], sizes = [16, 8], strides = [1, 1]} : vector<16x25xf32> to vector<16x8xf32>
    %68 = vector.extract_strided_slice %63 {offsets = [0, 16], sizes = [8, 16], strides = [1, 1]} : vector<8x48xf32> to vector<8x16xf32>
    %cst_15 = arith.constant dense<0.000000e+00> : vector<16x16xf32>
    %69 = tpu.matmul %67, %68, %cst_15 {dimension_numbers = #tpu.dot_dimension_numbers<[1], [0], [0], [1], [0, 0, 1, 1], [], []>} : vector<16x8xf32>, vector<8x16xf32>, vector<16x16xf32> -> vector<16x16xf32>
    %70 = vector.extract_strided_slice %61 {offsets = [0, 16], sizes = [16, 8], strides = [1, 1]} : vector<16x25xf32> to vector<16x8xf32>
    %71 = vector.extract_strided_slice %63 {offsets = [0, 32], sizes = [8, 16], strides = [1, 1]} : vector<8x48xf32> to vector<8x16xf32>
    %cst_16 = arith.constant dense<0.000000e+00> : vector<16x16xf32>
    %72 = tpu.matmul %70, %71, %cst_16 {dimension_numbers = #tpu.dot_dimension_numbers<[1], [0], [0], [1], [0, 0, 1, 1], [], []>} : vector<16x8xf32>, vector<8x16xf32>, vector<16x16xf32> -> vector<16x16xf32>
    %73 = arith.addf %66, %69 : vector<16x16xf32>
    %74 = arith.addf %73, %72 : vector<16x16xf32>
    %75 = vector.extract_strided_slice %61 {offsets = [0, 24], sizes = [16, 1], strides = [1, 1]} : vector<16x25xf32> to vector<16x1xf32>
    %76 = vector.shape_cast %75 : vector<16x1xf32> to vector<16x1xf32>
    %77 = vector.broadcast %76 : vector<16x1xf32> to vector<16x16xf32>
    %78 = arith.addf %77, %74 : vector<16x16xf32>
    %cst_17 = arith.constant 0.000000e+00 : f32
    %79 = vector.broadcast %cst_17 : f32 to vector<16x16xf32>
    %80 = arith.maximumf %78, %79 : vector<16x16xf32>
    %c96 = arith.constant 96 : index
    %c0_18 = arith.constant 0 : index
    %81 = vector.load %arg1[%c96, %c0_18] : memref<192x128xf32, #tpu.memory_space<vmem>>, vector<16x49xf32>
    %c112 = arith.constant 112 : index
    %c0_19 = arith.constant 0 : index
    %82 = vector.load %arg1[%c112, %c0_19] : memref<192x128xf32, #tpu.memory_space<vmem>>, vector<16x48xf32>
    %cst_20 = arith.constant dense<0.000000e+00> : vector<16x48xf32>
    %83 = tpu.matmul %80, %82, %cst_20 {dimension_numbers = #tpu.dot_dimension_numbers<[1], [0], [0], [1], [0, 0, 1, 1], [], []>} : vector<16x16xf32>, vector<16x48xf32>, vector<16x48xf32> -> vector<16x48xf32>
    %84 = vector.extract_strided_slice %81 {offsets = [0, 0], sizes = [16, 16], strides = [1, 1]} : vector<16x49xf32> to vector<16x16xf32>
    %85 = vector.extract_strided_slice %83 {offsets = [0, 0], sizes = [16, 16], strides = [1, 1]} : vector<16x48xf32> to vector<16x16xf32>
    %cst_21 = arith.constant dense<0.000000e+00> : vector<16x16xf32>
    %86 = tpu.matmul %84, %85, %cst_21 {dimension_numbers = #tpu.dot_dimension_numbers<[1], [0], [0], [1], [0, 0, 1, 1], [], []>} : vector<16x16xf32>, vector<16x16xf32>, vector<16x16xf32> -> vector<16x16xf32>
    %87 = vector.extract_strided_slice %81 {offsets = [0, 16], sizes = [16, 16], strides = [1, 1]} : vector<16x49xf32> to vector<16x16xf32>
    %88 = vector.extract_strided_slice %83 {offsets = [0, 16], sizes = [16, 16], strides = [1, 1]} : vector<16x48xf32> to vector<16x16xf32>
    %cst_22 = arith.constant dense<0.000000e+00> : vector<16x16xf32>
    %89 = tpu.matmul %87, %88, %cst_22 {dimension_numbers = #tpu.dot_dimension_numbers<[1], [0], [0], [1], [0, 0, 1, 1], [], []>} : vector<16x16xf32>, vector<16x16xf32>, vector<16x16xf32> -> vector<16x16xf32>
    %90 = vector.extract_strided_slice %81 {offsets = [0, 32], sizes = [16, 16], strides = [1, 1]} : vector<16x49xf32> to vector<16x16xf32>
    %91 = vector.extract_strided_slice %83 {offsets = [0, 32], sizes = [16, 16], strides = [1, 1]} : vector<16x48xf32> to vector<16x16xf32>
    %cst_23 = arith.constant dense<0.000000e+00> : vector<16x16xf32>
    %92 = tpu.matmul %90, %91, %cst_23 {dimension_numbers = #tpu.dot_dimension_numbers<[1], [0], [0], [1], [0, 0, 1, 1], [], []>} : vector<16x16xf32>, vector<16x16xf32>, vector<16x16xf32> -> vector<16x16xf32>
    %93 = arith.addf %86, %89 : vector<16x16xf32>
    %94 = arith.addf %93, %92 : vector<16x16xf32>
    %95 = vector.extract_strided_slice %81 {offsets = [0, 48], sizes = [16, 1], strides = [1, 1]} : vector<16x49xf32> to vector<16x1xf32>
    %96 = vector.shape_cast %95 : vector<16x1xf32> to vector<16x1xf32>
    %97 = vector.broadcast %96 : vector<16x1xf32> to vector<16x16xf32>
    %98 = arith.addf %97, %94 : vector<16x16xf32>
    %cst_24 = arith.constant 0.000000e+00 : f32
    %99 = vector.broadcast %cst_24 : f32 to vector<16x16xf32>
    %100 = arith.maximumf %98, %99 : vector<16x16xf32>
    %c128 = arith.constant 128 : index
    %c0_25 = arith.constant 0 : index
    %101 = vector.load %arg1[%c128, %c0_25] : memref<192x128xf32, #tpu.memory_space<vmem>>, vector<8x65xf32>
    %c136 = arith.constant 136 : index
    %c0_26 = arith.constant 0 : index
    %102 = vector.load %arg1[%c136, %c0_26] : memref<192x128xf32, #tpu.memory_space<vmem>>, vector<16x128xf32>
    %cst_27 = arith.constant dense<0.000000e+00> : vector<16x128xf32>
    %103 = tpu.matmul %100, %102, %cst_27 {dimension_numbers = #tpu.dot_dimension_numbers<[1], [0], [0], [1], [0, 0, 1, 1], [], []>} : vector<16x16xf32>, vector<16x128xf32>, vector<16x128xf32> -> vector<16x128xf32>
    %104 = vector.extract_strided_slice %101 {offsets = [0, 0], sizes = [8, 16], strides = [1, 1]} : vector<8x65xf32> to vector<8x16xf32>
    %105 = vector.extract_strided_slice %103 {offsets = [0, 0], sizes = [16, 32], strides = [1, 1]} : vector<16x128xf32> to vector<16x32xf32>
    %cst_28 = arith.constant dense<0.000000e+00> : vector<8x32xf32>
    %106 = tpu.matmul %104, %105, %cst_28 {dimension_numbers = #tpu.dot_dimension_numbers<[1], [0], [0], [1], [0, 0, 1, 1], [], []>} : vector<8x16xf32>, vector<16x32xf32>, vector<8x32xf32> -> vector<8x32xf32>
    %107 = vector.extract_strided_slice %101 {offsets = [0, 16], sizes = [8, 16], strides = [1, 1]} : vector<8x65xf32> to vector<8x16xf32>
    %108 = vector.extract_strided_slice %103 {offsets = [0, 32], sizes = [16, 32], strides = [1, 1]} : vector<16x128xf32> to vector<16x32xf32>
    %cst_29 = arith.constant dense<0.000000e+00> : vector<8x32xf32>
    %109 = tpu.matmul %107, %108, %cst_29 {dimension_numbers = #tpu.dot_dimension_numbers<[1], [0], [0], [1], [0, 0, 1, 1], [], []>} : vector<8x16xf32>, vector<16x32xf32>, vector<8x32xf32> -> vector<8x32xf32>
    %110 = vector.extract_strided_slice %101 {offsets = [0, 32], sizes = [8, 16], strides = [1, 1]} : vector<8x65xf32> to vector<8x16xf32>
    %111 = vector.extract_strided_slice %103 {offsets = [0, 64], sizes = [16, 32], strides = [1, 1]} : vector<16x128xf32> to vector<16x32xf32>
    %cst_30 = arith.constant dense<0.000000e+00> : vector<8x32xf32>
    %112 = tpu.matmul %110, %111, %cst_30 {dimension_numbers = #tpu.dot_dimension_numbers<[1], [0], [0], [1], [0, 0, 1, 1], [], []>} : vector<8x16xf32>, vector<16x32xf32>, vector<8x32xf32> -> vector<8x32xf32>
    %113 = vector.extract_strided_slice %101 {offsets = [0, 48], sizes = [8, 16], strides = [1, 1]} : vector<8x65xf32> to vector<8x16xf32>
    %114 = vector.extract_strided_slice %103 {offsets = [0, 96], sizes = [16, 32], strides = [1, 1]} : vector<16x128xf32> to vector<16x32xf32>
    %cst_31 = arith.constant dense<0.000000e+00> : vector<8x32xf32>
    %115 = tpu.matmul %113, %114, %cst_31 {dimension_numbers = #tpu.dot_dimension_numbers<[1], [0], [0], [1], [0, 0, 1, 1], [], []>} : vector<8x16xf32>, vector<16x32xf32>, vector<8x32xf32> -> vector<8x32xf32>
    %116 = arith.addf %106, %109 : vector<8x32xf32>
    %117 = arith.addf %112, %115 : vector<8x32xf32>
    %118 = arith.addf %116, %117 : vector<8x32xf32>
    %119 = vector.extract_strided_slice %101 {offsets = [0, 64], sizes = [8, 1], strides = [1, 1]} : vector<8x65xf32> to vector<8x1xf32>
    %120 = vector.shape_cast %119 : vector<8x1xf32> to vector<8x1xf32>
    %121 = vector.broadcast %120 : vector<8x1xf32> to vector<8x32xf32>
    %122 = arith.addf %121, %118 : vector<8x32xf32>
    %cst_32 = arith.constant 0.000000e+00 : f32
    %123 = vector.broadcast %cst_32 : f32 to vector<8x32xf32>
    %124 = arith.maximumf %122, %123 : vector<8x32xf32>
    %c152 = arith.constant 152 : index
    %c0_33 = arith.constant 0 : index
    %125 = vector.load %arg1[%c152, %c0_33] : memref<192x128xf32, #tpu.memory_space<vmem>>, vector<4x25xf32>
    %c160 = arith.constant 160 : index
    %c0_34 = arith.constant 0 : index
    %126 = vector.load %arg1[%c160, %c0_34] : memref<192x128xf32, #tpu.memory_space<vmem>>, vector<32x96xf32>
    %cst_35 = arith.constant dense<0.000000e+00> : vector<8x96xf32>
    %127 = tpu.matmul %124, %126, %cst_35 {dimension_numbers = #tpu.dot_dimension_numbers<[1], [0], [0], [1], [0, 0, 1, 1], [], []>} : vector<8x32xf32>, vector<32x96xf32>, vector<8x96xf32> -> vector<8x96xf32>
    %128 = vector.extract_strided_slice %125 {offsets = [0, 0], sizes = [4, 8], strides = [1, 1]} : vector<4x25xf32> to vector<4x8xf32>
    %129 = vector.extract_strided_slice %127 {offsets = [0, 0], sizes = [8, 32], strides = [1, 1]} : vector<8x96xf32> to vector<8x32xf32>
    %cst_36 = arith.constant dense<0.000000e+00> : vector<4x32xf32>
    %130 = tpu.matmul %128, %129, %cst_36 {dimension_numbers = #tpu.dot_dimension_numbers<[1], [0], [0], [1], [0, 0, 1, 1], [], []>} : vector<4x8xf32>, vector<8x32xf32>, vector<4x32xf32> -> vector<4x32xf32>
    %131 = vector.extract_strided_slice %125 {offsets = [0, 8], sizes = [4, 8], strides = [1, 1]} : vector<4x25xf32> to vector<4x8xf32>
    %132 = vector.extract_strided_slice %127 {offsets = [0, 32], sizes = [8, 32], strides = [1, 1]} : vector<8x96xf32> to vector<8x32xf32>
    %cst_37 = arith.constant dense<0.000000e+00> : vector<4x32xf32>
    %133 = tpu.matmul %131, %132, %cst_37 {dimension_numbers = #tpu.dot_dimension_numbers<[1], [0], [0], [1], [0, 0, 1, 1], [], []>} : vector<4x8xf32>, vector<8x32xf32>, vector<4x32xf32> -> vector<4x32xf32>
    %134 = vector.extract_strided_slice %125 {offsets = [0, 16], sizes = [4, 8], strides = [1, 1]} : vector<4x25xf32> to vector<4x8xf32>
    %135 = vector.extract_strided_slice %127 {offsets = [0, 64], sizes = [8, 32], strides = [1, 1]} : vector<8x96xf32> to vector<8x32xf32>
    %cst_38 = arith.constant dense<0.000000e+00> : vector<4x32xf32>
    %136 = tpu.matmul %134, %135, %cst_38 {dimension_numbers = #tpu.dot_dimension_numbers<[1], [0], [0], [1], [0, 0, 1, 1], [], []>} : vector<4x8xf32>, vector<8x32xf32>, vector<4x32xf32> -> vector<4x32xf32>
    %137 = arith.addf %130, %133 : vector<4x32xf32>
    %138 = arith.addf %137, %136 : vector<4x32xf32>
    %139 = vector.extract_strided_slice %125 {offsets = [0, 24], sizes = [4, 1], strides = [1, 1]} : vector<4x25xf32> to vector<4x1xf32>
    %140 = vector.shape_cast %139 : vector<4x1xf32> to vector<4x1xf32>
    %141 = vector.broadcast %140 : vector<4x1xf32> to vector<4x32xf32>
    %142 = arith.addf %141, %138 : vector<4x32xf32>
    %c0_39 = arith.constant 0 : index
    %c0_40 = arith.constant 0 : index
    %143 = vector.load %arg2[%c0_39, %c0_40] : memref<4x32xf32, #tpu.memory_space<vmem>>, vector<4x32xf32>
    tpu.vector_store %arg2[%c0_39, %c0_40], %142 {strides = array<i32>} : memref<4x32xf32, #tpu.memory_space<vmem>>, vector<4x32xf32>,
    return
  }
}

</mosaic_0001>

<llo_original>
// kernel: tpu_custom_call.1
$region0: #{tpu_custom_call.1}
  #allocation0 [shape = 'u32[]', space=smem, size = 0x4, offset = 0x4, fixed_abs, tag = 'smem constant byte address 0x4 - core index']
  #allocation1 [shape = 'u32[144,128]{1,0:T(1,128)}', space=vmem, size = 0x12000, scoped, tag = 'internal scratch']
  %s0 = inlined_call_operand.hbm [shape: f32[5,32], index: 0, kind: input, shape index: {}]
  %s1 = inlined_call_operand.hbm [shape: f32[192,128], index: 1, kind: input, shape index: {}]
  %s2 = inlined_call_operand.hbm [shape: f32[4,32], index: 2, kind: output, shape index: {}]
  %s3 = sld [smem:[#allocation0]]
  $region26: #{tpu_custom_call.1} parent=0
    _
  %s5 = ssub.s32 1, %s3
  %s6 = scalar_select 0, %s5, %s3
  $region1: #{tpu_custom_call.1} parent=0
    #allocation2 [shape = 'u8[4096]{0}', space=vmem, size = 0x1000, scoped, tag = 'input window, operand 0, single buffered']
    #allocation3 [shape = 's32[1]{0}', space=sflag, size = 0x4, scoped, tag = 'scoped memory for tpu_custom_call.1']
    #allocation4 [shape = 's32[1]{0}', space=sflag, size = 0x4, scoped, tag = 'scoped memory for tpu_custom_call.1']
    #allocation5 [shape = 'u8[98304]{0}', space=vmem, size = 0x18000, scoped, tag = 'input window, operand 1, single buffered']
    #allocation6 [shape = 's32[1]{0}', space=sflag, size = 0x4, scoped, tag = 'scoped memory for tpu_custom_call.1']
    #allocation7 [shape = 'u8[2048]{0}', space=vmem, size = 0x800, scoped, tag = 'output window, operand 0, single buffered']
    %7 = vsyncpa [#allocation3], 0
    %8 = vsyncpa [#allocation6], 0
    %9 = vsyncpa [#allocation4], 0
    // Predicated region
    $region2: #{tpu_custom_call.1} parent=1 // pred_check
      _
    $region3: #{tpu_custom_call.1} parent=1 // pred_check_branch
      %11 = sbr.rel (0) target = $region5
    $region4: #{tpu_custom_call.1} parent=1 // pred_region
      %s13 = ssub.s32 128, 128
      %14 = vsyncadd [#allocation3], %s13
      %s16 = sshll.u32 [#allocation2], 4
      %s17 = int_to_ptr.vmem [resolvable:$true] %s16
      %19 = dma.hbm_to_vmem [thread:$0]  %s0, 128, %s17, [#allocation3]
    $region5: #{tpu_custom_call.1} parent=1 // pred_fallthru
      _
    // Predicated region
    $region6: #{tpu_custom_call.1} parent=1 // pred_check
      _
    $region7: #{tpu_custom_call.1} parent=1 // pred_check_branch
      %21 = sbr.rel (0) target = $region9
    $region8: #{tpu_custom_call.1} parent=1 // pred_region
      %s23 = ssub.s32 3072, 3072
      %24 = vsyncadd [#allocation6], %s23
      %s25 = sshll.u32 [#allocation5], 4
      %s26 = int_to_ptr.vmem [resolvable:$true] %s25
      %31 = dma.hbm_to_vmem [thread:$0]  %s1, 3072, %s26, [#allocation6], 128, 128, 8
    $region9: #{tpu_custom_call.1} parent=1 // pred_fallthru
      _
    // Predicated region
    $region10: #{tpu_custom_call.1} parent=1 // pred_check
      _
    $region11: #{tpu_custom_call.1} parent=1 // pred_check_branch
      %33 = sbr.rel (0) target = $region13
    $region12: #{tpu_custom_call.1} parent=1 // pred_region
      %34 = dma.done [#allocation3], 128
    $region13: #{tpu_custom_call.1} parent=1 // pred_fallthru
      _
    // Predicated region
    $region14: #{tpu_custom_call.1} parent=1 // pred_check
      _
    $region15: #{tpu_custom_call.1} parent=1 // pred_check_branch
      %36 = sbr.rel (0) target = $region17
    $region16: #{tpu_custom_call.1} parent=1 // pred_region
      %37 = dma.done [#allocation6], 3072
    $region17: #{tpu_custom_call.1} parent=1 // pred_fallthru
      _
    %v38 = vld [vmem:[#allocation2] sm:$0xf]
    %v39 = vld [vmem:[#allocation2 + $0x4] sm:$0x1]
    %v40 = vld [vmem:[#allocation5] sm:$0xf]
    %42 = vset.pattern.permute.xlu0 4
    %43 = vperm.xlu0 %42, %v40
    %v44 = vpop.permute.xlu0 %43
    %v46 = vlaneseq
    %v47 = vshrl.u32 %v46, 7
    %v48 = vsub.s32 0, %v47
    %v49 = vrot.slane %v39, %v48
    %v50 = vmul.f32 %v44, %v49
    %51 = vset.pattern.permute.xlu0 5
    %52 = vperm.xlu0 %51, %v40
    %v53 = vpop.permute.xlu0 %52
    %v55 = vadd.f32 %v50, %v53
    %v56 = vmax.f32 %v55, 0.0
    %57 = vset.pattern.permute.xlu0 6
    %58 = vperm.xlu0 %57, %v40
    %v59 = vpop.permute.xlu0 %58
    %61 = vset.pattern.permute.xlu0 0
    %62 = vperm.xlu0 %61, %v40
    %v63 = vpop.permute.xlu0 %62
    %v65 = vlaneseq
    %v66 = vshrl.u32 %v65, 7
    %v67 = vsub.s32 0, %v66
    %v68 = vrot.slane %v56, %v67
    %v69 = vmul.f32 %v63, %v68
    %v70 = vadd.f32 %v59, %v69
    %71 = vset.pattern.permute.xlu0 1
    %72 = vperm.xlu0 %71, %v40
    %v73 = vpop.permute.xlu0 %72
    %v75 = vlaneseq
    %v76 = vshrl.u32 %v75, 7
    %v77 = vsub.s32 1, %v76
    %v78 = vrot.slane %v56, %v77
    %v79 = vmul.f32 %v73, %v78
    %v80 = vadd.f32 %v70, %v79
    %81 = vset.pattern.permute.xlu0 2
    %82 = vperm.xlu0 %81, %v40
    %v83 = vpop.permute.xlu0 %82
    %v85 = vlaneseq
    %v86 = vshrl.u32 %v85, 7
    %v87 = vsub.s32 2, %v86
    %v88 = vrot.slane %v56, %v87
    %v89 = vmul.f32 %v83, %v88
    %v90 = vadd.f32 %v80, %v89
    %91 = vset.pattern.permute.xlu0 3
    %92 = vperm.xlu0 %91, %v40
    %v93 = vpop.permute.xlu0 %92
    %v95 = vlaneseq
    %v96 = vshrl.u32 %v95, 7
    %v97 = vsub.s32 3, %v96
    %v98 = vrot.slane %v56, %v97
    %v99 = vmul.f32 %v93, %v98
    %v100 = vadd.f32 %v90, %v99
    %v101 = vadd.f32 %v38, %v100
    %v102 = vld [vmem:[#allocation5 + $0x8] sm:$0xff]
    %v103 = vld [vmem:[#allocation5 + $0x10] sm:$0xff]
    %v104 = vld [vmem:[#allocation5 + $0x18] sm:$0xff]
    %v105 = vld [vmem:[#allocation5 + $0x20] sm:$0xff]
    %v106 = vld [vmem:[#allocation5 + $0x28] sm:$0xff]
    %vm107 = vcmask 261120
    %v109 = vsel %vm107, %v101, 0
    %111 = vmatprep.subr.mxu0 0.0
    %112 = vmatpush1.msra.mxu0 0.0
    %113 = vmatprep.subr.mxu0 0.0
    %114 = vmatpush1.msra.mxu0 0.0
    %115 = vmatprep.subr.mxu0 0.0
    %116 = vmatpush1.msra.mxu0 0.0
    %117 = vmatprep.subr.mxu0 0.0
    %118 = vmatpush1.msra.mxu0 0.0
    %119 = vmatprep.subr.mxu0 0.0
    %120 = vmatpush1.msra.mxu0 0.0
    %121 = vmatprep.subr.mxu0 0.0
    %122 = vmatpush1.msra.mxu0 0.0
    %123 = vmatprep.subr.mxu0 0.0
    %124 = vmatpush1.msra.mxu0 0.0
    %125 = vmatprep.subr.mxu0 0.0
    %126 = vmatpush1.msra.mxu0 0.0
    %127 = vmatprep.subr.mxu0 0.0
    %128 = vmatpush1.msra.mxu0 0.0
    %129 = vmatprep.subr.mxu0 0.0
    %130 = vmatpush1.msra.mxu0 0.0
    %131 = vmatprep.subr.mxu0 0.0
    %132 = vmatpush1.msra.mxu0 0.0
    %133 = vmatprep.subr.mxu0 0.0
    %134 = vmatpush1.msra.mxu0 0.0
    %135 = vmatprep.subr.mxu0 0.0
    %136 = vmatpush1.msra.mxu0 %v106
    %137 = vmatprep.subr.mxu0 0.0
    %138 = vmatpush1.msra.mxu0 %v105
    %139 = vmatprep.subr.mxu0 0.0
    %140 = vmatpush1.msra.mxu0 %v104
    %141 = vmatprep.subr.mxu0 0.0
    %142 = vmatpush1.msra.mxu0 %v103
    %143 = vmatprep.subr.mxu0 0.0
    %144 = vmatpush2.msra.mxu0 0.0
    %145 = vmatprep.subr.mxu0 0.0
    %146 = vmatpush2.msra.mxu0 0.0
    %147 = vmatprep.subr.mxu0 0.0
    %148 = vmatpush2.msra.mxu0 0.0
    %149 = vmatprep.subr.mxu0 0.0
    %150 = vmatpush2.msra.mxu0 0.0
    %151 = vmatprep.subr.mxu0 0.0
    %152 = vmatpush2.msra.mxu0 0.0
    %153 = vmatprep.subr.mxu0 0.0
    %154 = vmatpush2.msra.mxu0 0.0
    %155 = vmatprep.subr.mxu0 0.0
    %156 = vmatpush2.msra.mxu0 0.0
    %157 = vmatprep.subr.mxu0 0.0
    %158 = vmatpush2.msra.mxu0 0.0
    %159 = vmatprep.subr.mxu0 0.0
    %160 = vmatpush2.msra.mxu0 0.0
    %161 = vmatprep.subr.mxu0 0.0
    %162 = vmatpush2.msra.mxu0 0.0
    %163 = vmatprep.subr.mxu0 0.0
    %164 = vmatpush2.msra.mxu0 0.0
    %165 = vmatprep.subr.mxu0 0.0
    %166 = vmatpush2.msra.mxu0 0.0
    %167 = vmatprep.subr.mxu0 0.0
    %168 = vmatpush2.msra.mxu0 0.0
    %169 = vmatprep.subr.mxu0 0.0
    %170 = vmatpush2.msra.mxu0 0.0
    %171 = vmatprep.subr.mxu0 0.0
    %172 = vmatpush2.msra.mxu0 0.0
    %173 = vmatprep.subr.mxu0 0.0
    %174 = vmatpush2.msra.mxu0 0.0
    %175 = vmatprep.mubr.f32.mxu0 0.0
    %176 = vmatmul.mubr.f32.gmra.mxu0 %v109
    %v177 = vpop.f32.mrf.mxu0
    %v178 = vadd.f32 0.0, %v177
    %v179 = vpop.f32.mrf.mxu0
    %180 = vdwg.mxu0
    %182 = vrot.lane.b32.xlu0 %v102, 124
    %v183 = vpop.permute.xlu0 %182
    %185 = vrot.lane.b32.xlu0 %v178, 96
    %v186 = vpop.permute.xlu0 %185
    %vm187 = vcmask 31744
    %v188 = vsel %vm187, %v183, 0
    %vm190 = vcmask 1043456
    %v191 = vsel %vm190, %v186, 0
    %193 = vmatprep.subr.mxu0 0.0
    %194 = vmatpush1.msra.mxu0 0.0
    %195 = vmatprep.subr.mxu0 0.0
    %196 = vmatpush1.msra.mxu0 0.0
    %197 = vmatprep.subr.mxu0 0.0
    %198 = vmatpush1.msra.mxu0 0.0
    %199 = vmatprep.subr.mxu0 0.0
    %200 = vmatpush1.msra.mxu0 0.0
    %201 = vmatprep.subr.mxu0 0.0
    %202 = vmatpush1.msra.mxu0 0.0
    %203 = vmatprep.subr.mxu0 0.0
    %204 = vmatpush1.msra.mxu0 0.0
    %205 = vmatprep.subr.mxu0 0.0
    %206 = vmatpush1.msra.mxu0 0.0
    %207 = vmatprep.subr.mxu0 0.0
    %208 = vmatpush1.msra.mxu0 0.0
    %209 = vmatprep.subr.mxu0 0.0
    %210 = vmatpush1.msra.mxu0 0.0
    %211 = vmatprep.subr.mxu0 0.0
    %212 = vmatpush1.msra.mxu0 0.0
    %213 = vmatprep.subr.mxu0 0.0
    %214 = vmatpush1.msra.mxu0 0.0
    %215 = vmatprep.subr.mxu0 0.0
    %216 = vmatpush1.msra.mxu0 0.0
    %217 = vmatprep.subr.mxu0 0.0
    %218 = vmatpush1.msra.mxu0 0.0
    %219 = vmatprep.subr.mxu0 0.0
    %220 = vmatpush1.msra.mxu0 0.0
    %221 = vmatprep.subr.mxu0 0.0
    %222 = vmatpush1.msra.mxu0 0.0
    %223 = vmatprep.subr.mxu0 0.0
    %224 = vmatpush1.msra.mxu0 %v191
    %225 = vmatprep.subr.mxu0 0.0
    %226 = vmatpush2.msra.mxu0 0.0
    %227 = vmatprep.subr.mxu0 0.0
    %228 = vmatpush2.msra.mxu0 0.0
    %229 = vmatprep.subr.mxu0 0.0
    %230 = vmatpush2.msra.mxu0 0.0
    %231 = vmatprep.subr.mxu0 0.0
    %232 = vmatpush2.msra.mxu0 0.0
    %233 = vmatprep.subr.mxu0 0.0
    %234 = vmatpush2.msra.mxu0 0.0
    %235 = vmatprep.subr.mxu0 0.0
    %236 = vmatpush2.msra.mxu0 0.0
    %237 = vmatprep.subr.mxu0 0.0
    %238 = vmatpush2.msra.mxu0 0.0
    %239 = vmatprep.subr.mxu0 0.0
    %240 = vmatpush2.msra.mxu0 0.0
    %241 = vmatprep.subr.mxu0 0.0
    %242 = vmatpush2.msra.mxu0 0.0
    %243 = vmatprep.subr.mxu0 0.0
    %244 = vmatpush2.msra.mxu0 0.0
    %245 = vmatprep.subr.mxu0 0.0
    %246 = vmatpush2.msra.mxu0 0.0
    %247 = vmatprep.subr.mxu0 0.0
    %248 = vmatpush2.msra.mxu0 0.0
    %249 = vmatprep.subr.mxu0 0.0
    %250 = vmatpush2.msra.mxu0 0.0
    %251 = vmatprep.subr.mxu0 0.0
    %252 = vmatpush2.msra.mxu0 0.0
    %253 = vmatprep.subr.mxu0 0.0
    %254 = vmatpush2.msra.mxu0 0.0
    %255 = vmatprep.subr.mxu0 0.0
    %256 = vmatpush2.msra.mxu0 0.0
    %257 = vmatprep.mubr.f32.mxu0 0.0
    %258 = vmatmul.mubr.f32.gmra.mxu0 %v188
    %v259 = vpop.f32.mrf.mxu0
    %v260 = vadd.f32 0.0, %v259
    %v261 = vpop.f32.mrf.mxu0
    %262 = vdwg.mxu0
    %263 = vrot.lane.b32.xlu0 %v102, 120
    %v264 = vpop.permute.xlu0 %263
    %265 = vrot.lane.b32.xlu0 %v178, 64
    %v266 = vpop.permute.xlu0 %265
    %v267 = vsel %vm187, %v264, 0
    %v269 = vsel %vm190, %v266, 0
    %271 = vmatprep.subr.mxu0 0.0
    %272 = vmatpush1.msra.mxu0 0.0
    %273 = vmatprep.subr.mxu0 0.0
    %274 = vmatpush1.msra.mxu0 0.0
    %275 = vmatprep.subr.mxu0 0.0
    %276 = vmatpush1.msra.mxu0 0.0
    %277 = vmatprep.subr.mxu0 0.0
    %278 = vmatpush1.msra.mxu0 0.0
    %279 = vmatprep.subr.mxu0 0.0
    %280 = vmatpush1.msra.mxu0 0.0
    %281 = vmatprep.subr.mxu0 0.0
    %282 = vmatpush1.msra.mxu0 0.0
    %283 = vmatprep.subr.mxu0 0.0
    %284 = vmatpush1.msra.mxu0 0.0
    %285 = vmatprep.subr.mxu0 0.0
    %286 = vmatpush1.msra.mxu0 0.0
    %287 = vmatprep.subr.mxu0 0.0
    %288 = vmatpush1.msra.mxu0 0.0
    %289 = vmatprep.subr.mxu0 0.0
    %290 = vmatpush1.msra.mxu0 0.0
    %291 = vmatprep.subr.mxu0 0.0
    %292 = vmatpush1.msra.mxu0 0.0
    %293 = vmatprep.subr.mxu0 0.0
    %294 = vmatpush1.msra.mxu0 0.0
    %295 = vmatprep.subr.mxu0 0.0
    %296 = vmatpush1.msra.mxu0 0.0
    %297 = vmatprep.subr.mxu0 0.0
    %298 = vmatpush1.msra.mxu0 0.0
    %299 = vmatprep.subr.mxu0 0.0
    %300 = vmatpush1.msra.mxu0 0.0
    %301 = vmatprep.subr.mxu0 0.0
    %302 = vmatpush1.msra.mxu0 %v269
    %303 = vmatprep.subr.mxu0 0.0
    %304 = vmatpush2.msra.mxu0 0.0
    %305 = vmatprep.subr.mxu0 0.0
    %306 = vmatpush2.msra.mxu0 0.0
    %307 = vmatprep.subr.mxu0 0.0
    %308 = vmatpush2.msra.mxu0 0.0
    %309 = vmatprep.subr.mxu0 0.0
    %310 = vmatpush2.msra.mxu0 0.0
    %311 = vmatprep.subr.mxu0 0.0
    %312 = vmatpush2.msra.mxu0 0.0
    %313 = vmatprep.subr.mxu0 0.0
    %314 = vmatpush2.msra.mxu0 0.0
    %315 = vmatprep.subr.mxu0 0.0
    %316 = vmatpush2.msra.mxu0 0.0
    %317 = vmatprep.subr.mxu0 0.0
    %318 = vmatpush2.msra.mxu0 0.0
    %319 = vmatprep.subr.mxu0 0.0
    %320 = vmatpush2.msra.mxu0 0.0
    %321 = vmatprep.subr.mxu0 0.0
    %322 = vmatpush2.msra.mxu0 0.0
    %323 = vmatprep.subr.mxu0 0.0
    %324 = vmatpush2.msra.mxu0 0.0
    %325 = vmatprep.subr.mxu0 0.0
    %326 = vmatpush2.msra.mxu0 0.0
    %327 = vmatprep.subr.mxu0 0.0
    %328 = vmatpush2.msra.mxu0 0.0
    %329 = vmatprep.subr.mxu0 0.0
    %330 = vmatpush2.msra.mxu0 0.0
    %331 = vmatprep.subr.mxu0 0.0
    %332 = vmatpush2.msra.mxu0 0.0
    %333 = vmatprep.subr.mxu0 0.0
    %334 = vmatpush2.msra.mxu0 0.0
    %335 = vmatprep.mubr.f32.mxu0 0.0
    %336 = vmatmul.mubr.f32.gmra.mxu0 %v267
    %v337 = vpop.f32.mrf.mxu0
    %v338 = vadd.f32 0.0, %v337
    %v339 = vpop.f32.mrf.mxu0
    %340 = vdwg.mxu0
    %v341 = vsel %vm187, %v102, 0
    %v343 = vsel %vm190, %v178, 0
    %345 = vmatprep.subr.mxu0 0.0
    %346 = vmatpush1.msra.mxu0 0.0
    %347 = vmatprep.subr.mxu0 0.0
    %348 = vmatpush1.msra.mxu0 0.0
    %349 = vmatprep.subr.mxu0 0.0
    %350 = vmatpush1.msra.mxu0 0.0
    %351 = vmatprep.subr.mxu0 0.0
    %352 = vmatpush1.msra.mxu0 0.0
    %353 = vmatprep.subr.mxu0 0.0
    %354 = vmatpush1.msra.mxu0 0.0
    %355 = vmatprep.subr.mxu0 0.0
    %356 = vmatpush1.msra.mxu0 0.0
    %357 = vmatprep.subr.mxu0 0.0
    %358 = vmatpush1.msra.mxu0 0.0
    %359 = vmatprep.subr.mxu0 0.0
    %360 = vmatpush1.msra.mxu0 0.0
    %361 = vmatprep.subr.mxu0 0.0
    %362 = vmatpush1.msra.mxu0 0.0
    %363 = vmatprep.subr.mxu0 0.0
    %364 = vmatpush1.msra.mxu0 0.0
    %365 = vmatprep.subr.mxu0 0.0
    %366 = vmatpush1.msra.mxu0 0.0
    %367 = vmatprep.subr.mxu0 0.0
    %368 = vmatpush1.msra.mxu0 0.0
    %369 = vmatprep.subr.mxu0 0.0
    %370 = vmatpush1.msra.mxu0 0.0
    %371 = vmatprep.subr.mxu0 0.0
    %372 = vmatpush1.msra.mxu0 0.0
    %373 = vmatprep.subr.mxu0 0.0
    %374 = vmatpush1.msra.mxu0 0.0
    %375 = vmatprep.subr.mxu0 0.0
    %376 = vmatpush1.msra.mxu0 %v343
    %377 = vmatprep.subr.mxu0 0.0
    %378 = vmatpush2.msra.mxu0 0.0
    %379 = vmatprep.subr.mxu0 0.0
    %380 = vmatpush2.msra.mxu0 0.0
    %381 = vmatprep.subr.mxu0 0.0
    %382 = vmatpush2.msra.mxu0 0.0
    %383 = vmatprep.subr.mxu0 0.0
    %384 = vmatpush2.msra.mxu0 0.0
    %385 = vmatprep.subr.mxu0 0.0
    %386 = vmatpush2.msra.mxu0 0.0
    %387 = vmatprep.subr.mxu0 0.0
    %388 = vmatpush2.msra.mxu0 0.0
    %389 = vmatprep.subr.mxu0 0.0
    %390 = vmatpush2.msra.mxu0 0.0
    %391 = vmatprep.subr.mxu0 0.0
    %392 = vmatpush2.msra.mxu0 0.0
    %393 = vmatprep.subr.mxu0 0.0
    %394 = vmatpush2.msra.mxu0 0.0
    %395 = vmatprep.subr.mxu0 0.0
    %396 = vmatpush2.msra.mxu0 0.0
    %397 = vmatprep.subr.mxu0 0.0
    %398 = vmatpush2.msra.mxu0 0.0
    %399 = vmatprep.subr.mxu0 0.0
    %400 = vmatpush2.msra.mxu0 0.0
    %401 = vmatprep.subr.mxu0 0.0
    %402 = vmatpush2.msra.mxu0 0.0
    %403 = vmatprep.subr.mxu0 0.0
    %404 = vmatpush2.msra.mxu0 0.0
    %405 = vmatprep.subr.mxu0 0.0
    %406 = vmatpush2.msra.mxu0 0.0
    %407 = vmatprep.subr.mxu0 0.0
    %408 = vmatpush2.msra.mxu0 0.0
    %409 = vmatprep.mubr.f32.mxu0 0.0
    %410 = vmatmul.mubr.f32.gmra.mxu0 %v341
    %v411 = vpop.f32.mrf.mxu0
    %v412 = vadd.f32 %v260, %v411
    %v413 = vpop.f32.mrf.mxu0
    %414 = vdwg.mxu0
    %v415 = vadd.f32 %v412, %v338
    %416 = vset.pattern.permute.xlu0 12
    %417 = vperm.xlu0 %416, %v102
    %v418 = vpop.permute.xlu0 %417
    %v420 = vadd.f32 %v418, %v415
    %v421 = vmax.f32 %v420, 0.0
    %v422 = vld [vmem:[#allocation5 + $0x30] sm:$0xff]
    %v423 = vld [vmem:[#allocation5 + $0x38] sm:$0xff]
    %v424 = vld [vmem:[#allocation5 + $0x40] sm:$0xff]
    %v425 = vld [vmem:[#allocation5 + $0x48] sm:$0xff]
    %v426 = vld [vmem:[#allocation5 + $0x50] sm:$0xff]
    %v427 = vld [vmem:[#allocation5 + $0x58] sm:$0xff]
    %v429 = vsel %vm107, %v421, 0
    %431 = vmatprep.subr.mxu0 0.0
    %432 = vmatpush1.msra.mxu0 0.0
    %433 = vmatprep.subr.mxu0 0.0
    %434 = vmatpush1.msra.mxu0 0.0
    %435 = vmatprep.subr.mxu0 0.0
    %436 = vmatpush1.msra.mxu0 0.0
    %437 = vmatprep.subr.mxu0 0.0
    %438 = vmatpush1.msra.mxu0 0.0
    %439 = vmatprep.subr.mxu0 0.0
    %440 = vmatpush1.msra.mxu0 0.0
    %441 = vmatprep.subr.mxu0 0.0
    %442 = vmatpush1.msra.mxu0 0.0
    %443 = vmatprep.subr.mxu0 0.0
    %444 = vmatpush1.msra.mxu0 0.0
    %445 = vmatprep.subr.mxu0 0.0
    %446 = vmatpush1.msra.mxu0 0.0
    %447 = vmatprep.subr.mxu0 0.0
    %448 = vmatpush1.msra.mxu0 0.0
    %449 = vmatprep.subr.mxu0 0.0
    %450 = vmatpush1.msra.mxu0 0.0
    %451 = vmatprep.subr.mxu0 0.0
    %452 = vmatpush1.msra.mxu0 0.0
    %453 = vmatprep.subr.mxu0 0.0
    %454 = vmatpush1.msra.mxu0 0.0
    %455 = vmatprep.subr.mxu0 0.0
    %456 = vmatpush1.msra.mxu0 %v427
    %457 = vmatprep.subr.mxu0 0.0
    %458 = vmatpush1.msra.mxu0 %v426
    %459 = vmatprep.subr.mxu0 0.0
    %460 = vmatpush1.msra.mxu0 %v425
    %461 = vmatprep.subr.mxu0 0.0
    %462 = vmatpush1.msra.mxu0 %v424
    %463 = vmatprep.subr.mxu0 0.0
    %464 = vmatpush2.msra.mxu0 0.0
    %465 = vmatprep.subr.mxu0 0.0
    %466 = vmatpush2.msra.mxu0 0.0
    %467 = vmatprep.subr.mxu0 0.0
    %468 = vmatpush2.msra.mxu0 0.0
    %469 = vmatprep.subr.mxu0 0.0
    %470 = vmatpush2.msra.mxu0 0.0
    %471 = vmatprep.subr.mxu0 0.0
    %472 = vmatpush2.msra.mxu0 0.0
    %473 = vmatprep.subr.mxu0 0.0
    %474 = vmatpush2.msra.mxu0 0.0
    %475 = vmatprep.subr.mxu0 0.0
    %476 = vmatpush2.msra.mxu0 0.0
    %477 = vmatprep.subr.mxu0 0.0
    %478 = vmatpush2.msra.mxu0 0.0
    %479 = vmatprep.subr.mxu0 0.0
    %480 = vmatpush2.msra.mxu0 0.0
    %481 = vmatprep.subr.mxu0 0.0
    %482 = vmatpush2.msra.mxu0 0.0
    %483 = vmatprep.subr.mxu0 0.0
    %484 = vmatpush2.msra.mxu0 0.0
    %485 = vmatprep.subr.mxu0 0.0
    %486 = vmatpush2.msra.mxu0 0.0
    %487 = vmatprep.subr.mxu0 0.0
    %488 = vmatpush2.msra.mxu0 0.0
    %489 = vmatprep.subr.mxu0 0.0
    %490 = vmatpush2.msra.mxu0 0.0
    %491 = vmatprep.subr.mxu0 0.0
    %492 = vmatpush2.msra.mxu0 0.0
    %493 = vmatprep.subr.mxu0 0.0
    %494 = vmatpush2.msra.mxu0 0.0
    %495 = vmatprep.mubr.f32.mxu0 0.0
    %496 = vmatmul.mubr.f32.gmra.mxu0 %v429
    %v497 = vpop.f32.mrf.mxu0
    %v498 = vadd.f32 0.0, %v497
    %v499 = vpop.f32.mrf.mxu0
    %500 = vdwg.mxu0
    %503 = vrot.lane.b32.xlu0 %v422, 120
    %v504 = vpop.permute.xlu0 %503
    %505 = vrot.lane.b32.xlu0 %v423, 120
    %v506 = vpop.permute.xlu0 %505
    %508 = vrot.lane.b32.xlu0 %v498, 112
    %v509 = vpop.permute.xlu0 %508
    %vm511 = vcmask 64512
    %v512 = vsel %vm511, %v504, 0
    %v514 = vsel %vm511, %v506, 0
    %516 = vmatprep.subr.mxu0 0.0
    %517 = vmatpush1.msra.mxu0 0.0
    %518 = vmatprep.subr.mxu0 0.0
    %519 = vmatpush1.msra.mxu0 0.0
    %520 = vmatprep.subr.mxu0 0.0
    %521 = vmatpush1.msra.mxu0 0.0
    %522 = vmatprep.subr.mxu0 0.0
    %523 = vmatpush1.msra.mxu0 0.0
    %524 = vmatprep.subr.mxu0 0.0
    %525 = vmatpush1.msra.mxu0 0.0
    %526 = vmatprep.subr.mxu0 0.0
    %527 = vmatpush1.msra.mxu0 0.0
    %528 = vmatprep.subr.mxu0 0.0
    %529 = vmatpush1.msra.mxu0 0.0
    %530 = vmatprep.subr.mxu0 0.0
    %531 = vmatpush1.msra.mxu0 0.0
    %532 = vmatprep.subr.mxu0 0.0
    %533 = vmatpush1.msra.mxu0 0.0
    %534 = vmatprep.subr.mxu0 0.0
    %535 = vmatpush1.msra.mxu0 0.0
    %536 = vmatprep.subr.mxu0 0.0
    %537 = vmatpush1.msra.mxu0 0.0
    %538 = vmatprep.subr.mxu0 0.0
    %539 = vmatpush1.msra.mxu0 0.0
    %540 = vmatprep.subr.mxu0 0.0
    %541 = vmatpush1.msra.mxu0 0.0
    %542 = vmatprep.subr.mxu0 0.0
    %543 = vmatpush1.msra.mxu0 0.0
    %544 = vmatprep.subr.mxu0 0.0
    %545 = vmatpush1.msra.mxu0 0.0
    %546 = vmatprep.subr.mxu0 0.0
    %547 = vmatpush1.msra.mxu0 %v509
    %548 = vmatprep.subr.mxu0 0.0
    %549 = vmatpush2.msra.mxu0 0.0
    %550 = vmatprep.subr.mxu0 0.0
    %551 = vmatpush2.msra.mxu0 0.0
    %552 = vmatprep.subr.mxu0 0.0
    %553 = vmatpush2.msra.mxu0 0.0
    %554 = vmatprep.subr.mxu0 0.0
    %555 = vmatpush2.msra.mxu0 0.0
    %556 = vmatprep.subr.mxu0 0.0
    %557 = vmatpush2.msra.mxu0 0.0
    %558 = vmatprep.subr.mxu0 0.0
    %559 = vmatpush2.msra.mxu0 0.0
    %560 = vmatprep.subr.mxu0 0.0
    %561 = vmatpush2.msra.mxu0 0.0
    %562 = vmatprep.subr.mxu0 0.0
    %563 = vmatpush2.msra.mxu0 0.0
    %564 = vmatprep.subr.mxu0 0.0
    %565 = vmatpush2.msra.mxu0 0.0
    %566 = vmatprep.subr.mxu0 0.0
    %567 = vmatpush2.msra.mxu0 0.0
    %568 = vmatprep.subr.mxu0 0.0
    %569 = vmatpush2.msra.mxu0 0.0
    %570 = vmatprep.subr.mxu0 0.0
    %571 = vmatpush2.msra.mxu0 0.0
    %572 = vmatprep.subr.mxu0 0.0
    %573 = vmatpush2.msra.mxu0 0.0
    %574 = vmatprep.subr.mxu0 0.0
    %575 = vmatpush2.msra.mxu0 0.0
    %576 = vmatprep.subr.mxu0 0.0
    %577 = vmatpush2.msra.mxu0 0.0
    %578 = vmatprep.subr.mxu0 0.0
    %579 = vmatpush2.msra.mxu0 0.0
    %580 = vmatprep.mubr.f32.mxu0 0.0
    %581 = vmatmul.mubr.f32.gmra.mxu0 %v512
    %v582 = vpop.f32.mrf.mxu0
    %v583 = vadd.f32 0.0, %v582
    %v584 = vpop.f32.mrf.mxu0
    %585 = vmatprep.mubr.f32.mxu0 0.0
    %586 = vmatmul.mubr.f32.gmra.mxu0 %v514
    %v587 = vpop.f32.mrf.mxu0
    %v588 = vadd.f32 0.0, %v587
    %v589 = vpop.f32.mrf.mxu0
    %590 = vdwg.mxu0
    %591 = vrot.lane.b32.xlu0 %v422, 112
    %v592 = vpop.permute.xlu0 %591
    %593 = vrot.lane.b32.xlu0 %v423, 112
    %v594 = vpop.permute.xlu0 %593
    %595 = vrot.lane.b32.xlu0 %v498, 96
    %v596 = vpop.permute.xlu0 %595
    %v598 = vsel %vm511, %v592, 0
    %v600 = vsel %vm511, %v594, 0
    %602 = vmatprep.subr.mxu0 0.0
    %603 = vmatpush1.msra.mxu0 0.0
    %604 = vmatprep.subr.mxu0 0.0
    %605 = vmatpush1.msra.mxu0 0.0
    %606 = vmatprep.subr.mxu0 0.0
    %607 = vmatpush1.msra.mxu0 0.0
    %608 = vmatprep.subr.mxu0 0.0
    %609 = vmatpush1.msra.mxu0 0.0
    %610 = vmatprep.subr.mxu0 0.0
    %611 = vmatpush1.msra.mxu0 0.0
    %612 = vmatprep.subr.mxu0 0.0
    %613 = vmatpush1.msra.mxu0 0.0
    %614 = vmatprep.subr.mxu0 0.0
    %615 = vmatpush1.msra.mxu0 0.0
    %616 = vmatprep.subr.mxu0 0.0
    %617 = vmatpush1.msra.mxu0 0.0
    %618 = vmatprep.subr.mxu0 0.0
    %619 = vmatpush1.msra.mxu0 0.0
    %620 = vmatprep.subr.mxu0 0.0
    %621 = vmatpush1.msra.mxu0 0.0
    %622 = vmatprep.subr.mxu0 0.0
    %623 = vmatpush1.msra.mxu0 0.0
    %624 = vmatprep.subr.mxu0 0.0
    %625 = vmatpush1.msra.mxu0 0.0
    %626 = vmatprep.subr.mxu0 0.0
    %627 = vmatpush1.msra.mxu0 0.0
    %628 = vmatprep.subr.mxu0 0.0
    %629 = vmatpush1.msra.mxu0 0.0
    %630 = vmatprep.subr.mxu0 0.0
    %631 = vmatpush1.msra.mxu0 0.0
    %632 = vmatprep.subr.mxu0 0.0
    %633 = vmatpush1.msra.mxu0 %v596
    %634 = vmatprep.subr.mxu0 0.0
    %635 = vmatpush2.msra.mxu0 0.0
    %636 = vmatprep.subr.mxu0 0.0
    %637 = vmatpush2.msra.mxu0 0.0
    %638 = vmatprep.subr.mxu0 0.0
    %639 = vmatpush2.msra.mxu0 0.0
    %640 = vmatprep.subr.mxu0 0.0
    %641 = vmatpush2.msra.mxu0 0.0
    %642 = vmatprep.subr.mxu0 0.0
    %643 = vmatpush2.msra.mxu0 0.0
    %644 = vmatprep.subr.mxu0 0.0
    %645 = vmatpush2.msra.mxu0 0.0
    %646 = vmatprep.subr.mxu0 0.0
    %647 = vmatpush2.msra.mxu0 0.0
    %648 = vmatprep.subr.mxu0 0.0
    %649 = vmatpush2.msra.mxu0 0.0
    %650 = vmatprep.subr.mxu0 0.0
    %651 = vmatpush2.msra.mxu0 0.0
    %652 = vmatprep.subr.mxu0 0.0
    %653 = vmatpush2.msra.mxu0 0.0
    %654 = vmatprep.subr.mxu0 0.0
    %655 = vmatpush2.msra.mxu0 0.0
    %656 = vmatprep.subr.mxu0 0.0
    %657 = vmatpush2.msra.mxu0 0.0
    %658 = vmatprep.subr.mxu0 0.0
    %659 = vmatpush2.msra.mxu0 0.0
    %660 = vmatprep.subr.mxu0 0.0
    %661 = vmatpush2.msra.mxu0 0.0
    %662 = vmatprep.subr.mxu0 0.0
    %663 = vmatpush2.msra.mxu0 0.0
    %664 = vmatprep.subr.mxu0 0.0
    %665 = vmatpush2.msra.mxu0 0.0
    %666 = vmatprep.mubr.f32.mxu0 0.0
    %667 = vmatmul.mubr.f32.gmra.mxu0 %v598
    %v668 = vpop.f32.mrf.mxu0
    %v669 = vadd.f32 0.0, %v668
    %v670 = vpop.f32.mrf.mxu0
    %671 = vmatprep.mubr.f32.mxu0 0.0
    %672 = vmatmul.mubr.f32.gmra.mxu0 %v600
    %v673 = vpop.f32.mrf.mxu0
    %v674 = vadd.f32 0.0, %v673
    %v675 = vpop.f32.mrf.mxu0
    %676 = vdwg.mxu0
    %v677 = vsel %vm511, %v422, 0
    %v679 = vsel %vm511, %v423, 0
    %681 = vmatprep.subr.mxu0 0.0
    %682 = vmatpush1.msra.mxu0 0.0
    %683 = vmatprep.subr.mxu0 0.0
    %684 = vmatpush1.msra.mxu0 0.0
    %685 = vmatprep.subr.mxu0 0.0
    %686 = vmatpush1.msra.mxu0 0.0
    %687 = vmatprep.subr.mxu0 0.0
    %688 = vmatpush1.msra.mxu0 0.0
    %689 = vmatprep.subr.mxu0 0.0
    %690 = vmatpush1.msra.mxu0 0.0
    %691 = vmatprep.subr.mxu0 0.0
    %692 = vmatpush1.msra.mxu0 0.0
    %693 = vmatprep.subr.mxu0 0.0
    %694 = vmatpush1.msra.mxu0 0.0
    %695 = vmatprep.subr.mxu0 0.0
    %696 = vmatpush1.msra.mxu0 0.0
    %697 = vmatprep.subr.mxu0 0.0
    %698 = vmatpush1.msra.mxu0 0.0
    %699 = vmatprep.subr.mxu0 0.0
    %700 = vmatpush1.msra.mxu0 0.0
    %701 = vmatprep.subr.mxu0 0.0
    %702 = vmatpush1.msra.mxu0 0.0
    %703 = vmatprep.subr.mxu0 0.0
    %704 = vmatpush1.msra.mxu0 0.0
    %705 = vmatprep.subr.mxu0 0.0
    %706 = vmatpush1.msra.mxu0 0.0
    %707 = vmatprep.subr.mxu0 0.0
    %708 = vmatpush1.msra.mxu0 0.0
    %709 = vmatprep.subr.mxu0 0.0
    %710 = vmatpush1.msra.mxu0 0.0
    %711 = vmatprep.subr.mxu0 0.0
    %712 = vmatpush1.msra.mxu0 %v498
    %713 = vmatprep.subr.mxu0 0.0
    %714 = vmatpush2.msra.mxu0 0.0
    %715 = vmatprep.subr.mxu0 0.0
    %716 = vmatpush2.msra.mxu0 0.0
    %717 = vmatprep.subr.mxu0 0.0
    %718 = vmatpush2.msra.mxu0 0.0
    %719 = vmatprep.subr.mxu0 0.0
    %720 = vmatpush2.msra.mxu0 0.0
    %721 = vmatprep.subr.mxu0 0.0
    %722 = vmatpush2.msra.mxu0 0.0
    %723 = vmatprep.subr.mxu0 0.0
    %724 = vmatpush2.msra.mxu0 0.0
    %725 = vmatprep.subr.mxu0 0.0
    %726 = vmatpush2.msra.mxu0 0.0
    %727 = vmatprep.subr.mxu0 0.0
    %728 = vmatpush2.msra.mxu0 0.0
    %729 = vmatprep.subr.mxu0 0.0
    %730 = vmatpush2.msra.mxu0 0.0
    %731 = vmatprep.subr.mxu0 0.0
    %732 = vmatpush2.msra.mxu0 0.0
    %733 = vmatprep.subr.mxu0 0.0
    %734 = vmatpush2.msra.mxu0 0.0
    %735 = vmatprep.subr.mxu0 0.0
    %736 = vmatpush2.msra.mxu0 0.0
    %737 = vmatprep.subr.mxu0 0.0
    %738 = vmatpush2.msra.mxu0 0.0
    %739 = vmatprep.subr.mxu0 0.0
    %740 = vmatpush2.msra.mxu0 0.0
    %741 = vmatprep.subr.mxu0 0.0
    %742 = vmatpush2.msra.mxu0 0.0
    %743 = vmatprep.subr.mxu0 0.0
    %744 = vmatpush2.msra.mxu0 0.0
    %745 = vmatprep.mubr.f32.mxu0 0.0
    %746 = vmatmul.mubr.f32.gmra.mxu0 %v677
    %v747 = vpop.f32.mrf.mxu0
    %v748 = vadd.f32 %v583, %v747
    %v749 = vpop.f32.mrf.mxu0
    %750 = vmatprep.mubr.f32.mxu0 0.0
    %751 = vmatmul.mubr.f32.gmra.mxu0 %v679
    %v752 = vpop.f32.mrf.mxu0
    %v753 = vadd.f32 %v588, %v752
    %v754 = vpop.f32.mrf.mxu0
    %755 = vdwg.mxu0
    %v756 = vadd.f32 %v748, %v669
    %v757 = vadd.f32 %v753, %v674
    %758 = vset.pattern.permute.xlu0 24
    %759 = vperm.xlu0 %758, %v422
    %v760 = vpop.permute.xlu0 %759
    %762 = vset.pattern.permute.xlu0 24
    %763 = vperm.xlu0 %762, %v423
    %v764 = vpop.permute.xlu0 %763
    %v766 = vadd.f32 %v760, %v756
    %v767 = vadd.f32 %v764, %v757
    %v768 = vmax.f32 %v766, 0.0
    %v769 = vmax.f32 %v767, 0.0
    %v770 = vld [vmem:[#allocation5 + $0x60] sm:$0xff]
    %v771 = vld [vmem:[#allocation5 + $0x68] sm:$0xff]
    %v772 = vld [vmem:[#allocation5 + $0x70] sm:$0xff]
    %v773 = vld [vmem:[#allocation5 + $0x78] sm:$0xff]
    %vm774 = vcmask 130048
    %v776 = vsel %vm774, %v768, 0
    %v779 = vsel %vm774, %v769, 0
    %781 = vmatprep.subr.mxu0 0.0
    %782 = vmatpush1.msra.mxu0 0.0
    %783 = vmatprep.subr.mxu0 0.0
    %784 = vmatpush1.msra.mxu0 0.0
    %785 = vmatprep.subr.mxu0 0.0
    %786 = vmatpush1.msra.mxu0 0.0
    %787 = vmatprep.subr.mxu0 0.0
    %788 = vmatpush1.msra.mxu0 0.0
    %789 = vmatprep.subr.mxu0 0.0
    %790 = vmatpush1.msra.mxu0 0.0
    %791 = vmatprep.subr.mxu0 0.0
    %792 = vmatpush1.msra.mxu0 0.0
    %793 = vmatprep.subr.mxu0 0.0
    %794 = vmatpush1.msra.mxu0 0.0
    %795 = vmatprep.subr.mxu0 0.0
    %796 = vmatpush1.msra.mxu0 0.0
    %797 = vmatprep.subr.mxu0 0.0
    %798 = vmatpush1.msra.mxu0 0.0
    %799 = vmatprep.subr.mxu0 0.0
    %800 = vmatpush1.msra.mxu0 0.0
    %801 = vmatprep.subr.mxu0 0.0
    %802 = vmatpush1.msra.mxu0 0.0
    %803 = vmatprep.subr.mxu0 0.0
    %804 = vmatpush1.msra.mxu0 0.0
    %805 = vmatprep.subr.mxu0 0.0
    %806 = vmatpush1.msra.mxu0 0.0
    %807 = vmatprep.subr.mxu0 0.0
    %808 = vmatpush1.msra.mxu0 0.0
    %809 = vmatprep.subr.mxu0 0.0
    %810 = vmatpush1.msra.mxu0 %v773
    %811 = vmatprep.subr.mxu0 0.0
    %812 = vmatpush1.msra.mxu0 %v772
    %813 = vmatprep.subr.mxu0 0.0
    %814 = vmatpush2.msra.mxu0 0.0
    %815 = vmatprep.subr.mxu0 0.0
    %816 = vmatpush2.msra.mxu0 0.0
    %817 = vmatprep.subr.mxu0 0.0
    %818 = vmatpush2.msra.mxu0 0.0
    %819 = vmatprep.subr.mxu0 0.0
    %820 = vmatpush2.msra.mxu0 0.0
    %821 = vmatprep.subr.mxu0 0.0
    %822 = vmatpush2.msra.mxu0 0.0
    %823 = vmatprep.subr.mxu0 0.0
    %824 = vmatpush2.msra.mxu0 0.0
    %825 = vmatprep.subr.mxu0 0.0
    %826 = vmatpush2.msra.mxu0 0.0
    %827 = vmatprep.subr.mxu0 0.0
    %828 = vmatpush2.msra.mxu0 0.0
    %829 = vmatprep.subr.mxu0 0.0
    %830 = vmatpush2.msra.mxu0 0.0
    %831 = vmatprep.subr.mxu0 0.0
    %832 = vmatpush2.msra.mxu0 0.0
    %833 = vmatprep.subr.mxu0 0.0
    %834 = vmatpush2.msra.mxu0 0.0
    %835 = vmatprep.subr.mxu0 0.0
    %836 = vmatpush2.msra.mxu0 0.0
    %837 = vmatprep.subr.mxu0 0.0
    %838 = vmatpush2.msra.mxu0 0.0
    %839 = vmatprep.subr.mxu0 0.0
    %840 = vmatpush2.msra.mxu0 0.0
    %841 = vmatprep.subr.mxu0 0.0
    %842 = vmatpush2.msra.mxu0 0.0
    %843 = vmatprep.subr.mxu0 0.0
    %844 = vmatpush2.msra.mxu0 0.0
    %845 = vmatprep.mubr.f32.mxu0 0.0
    %846 = vmatmul.mubr.f32.gmra.mxu0 %v776
    %v847 = vpop.f32.mrf.mxu0
    %v848 = vadd.f32 0.0, %v847
    %v849 = vpop.f32.mrf.mxu0
    %850 = vmatprep.mubr.f32.mxu0 0.0
    %851 = vmatmul.mubr.f32.gmra.mxu0 %v779
    %v852 = vpop.f32.mrf.mxu0
    %v853 = vadd.f32 0.0, %v852
    %v854 = vpop.f32.mrf.mxu0
    %855 = vdwg.mxu0
    %858 = vrot.lane.b32.xlu0 %v770, 112
    %v859 = vpop.permute.xlu0 %858
    %860 = vrot.lane.b32.xlu0 %v771, 112
    %v861 = vpop.permute.xlu0 %860
    %864 = vrot.lane.b32.xlu0 %v848, 112
    %v865 = vpop.permute.xlu0 %864
    %866 = vrot.lane.b32.xlu0 %v853, 112
    %v867 = vpop.permute.xlu0 %866
    %v870 = vsel %vm774, %v859, 0
    %v872 = vsel %vm774, %v861, 0
    %874 = vmatprep.subr.mxu0 0.0
    %875 = vmatpush1.msra.mxu0 0.0
    %876 = vmatprep.subr.mxu0 0.0
    %877 = vmatpush1.msra.mxu0 0.0
    %878 = vmatprep.subr.mxu0 0.0
    %879 = vmatpush1.msra.mxu0 0.0
    %880 = vmatprep.subr.mxu0 0.0
    %881 = vmatpush1.msra.mxu0 0.0
    %882 = vmatprep.subr.mxu0 0.0
    %883 = vmatpush1.msra.mxu0 0.0
    %884 = vmatprep.subr.mxu0 0.0
    %885 = vmatpush1.msra.mxu0 0.0
    %886 = vmatprep.subr.mxu0 0.0
    %887 = vmatpush1.msra.mxu0 0.0
    %888 = vmatprep.subr.mxu0 0.0
    %889 = vmatpush1.msra.mxu0 0.0
    %890 = vmatprep.subr.mxu0 0.0
    %891 = vmatpush1.msra.mxu0 0.0
    %892 = vmatprep.subr.mxu0 0.0
    %893 = vmatpush1.msra.mxu0 0.0
    %894 = vmatprep.subr.mxu0 0.0
    %895 = vmatpush1.msra.mxu0 0.0
    %896 = vmatprep.subr.mxu0 0.0
    %897 = vmatpush1.msra.mxu0 0.0
    %898 = vmatprep.subr.mxu0 0.0
    %899 = vmatpush1.msra.mxu0 0.0
    %900 = vmatprep.subr.mxu0 0.0
    %901 = vmatpush1.msra.mxu0 0.0
    %902 = vmatprep.subr.mxu0 0.0
    %903 = vmatpush1.msra.mxu0 %v867
    %904 = vmatprep.subr.mxu0 0.0
    %905 = vmatpush1.msra.mxu0 %v865
    %906 = vmatprep.subr.mxu0 0.0
    %907 = vmatpush2.msra.mxu0 0.0
    %908 = vmatprep.subr.mxu0 0.0
    %909 = vmatpush2.msra.mxu0 0.0
    %910 = vmatprep.subr.mxu0 0.0
    %911 = vmatpush2.msra.mxu0 0.0
    %912 = vmatprep.subr.mxu0 0.0
    %913 = vmatpush2.msra.mxu0 0.0
    %914 = vmatprep.subr.mxu0 0.0
    %915 = vmatpush2.msra.mxu0 0.0
    %916 = vmatprep.subr.mxu0 0.0
    %917 = vmatpush2.msra.mxu0 0.0
    %918 = vmatprep.subr.mxu0 0.0
    %919 = vmatpush2.msra.mxu0 0.0
    %920 = vmatprep.subr.mxu0 0.0
    %921 = vmatpush2.msra.mxu0 0.0
    %922 = vmatprep.subr.mxu0 0.0
    %923 = vmatpush2.msra.mxu0 0.0
    %924 = vmatprep.subr.mxu0 0.0
    %925 = vmatpush2.msra.mxu0 0.0
    %926 = vmatprep.subr.mxu0 0.0
    %927 = vmatpush2.msra.mxu0 0.0
    %928 = vmatprep.subr.mxu0 0.0
    %929 = vmatpush2.msra.mxu0 0.0
    %930 = vmatprep.subr.mxu0 0.0
    %931 = vmatpush2.msra.mxu0 0.0
    %932 = vmatprep.subr.mxu0 0.0
    %933 = vmatpush2.msra.mxu0 0.0
    %934 = vmatprep.subr.mxu0 0.0
    %935 = vmatpush2.msra.mxu0 0.0
    %936 = vmatprep.subr.mxu0 0.0
    %937 = vmatpush2.msra.mxu0 0.0
    %938 = vmatprep.mubr.f32.mxu0 0.0
    %939 = vmatmul.mubr.f32.gmra.mxu0 %v870
    %v940 = vpop.f32.mrf.mxu0
    %v941 = vadd.f32 0.0, %v940
    %v942 = vpop.f32.mrf.mxu0
    %943 = vmatprep.mubr.f32.mxu0 0.0
    %944 = vmatmul.mubr.f32.gmra.mxu0 %v872
    %v945 = vpop.f32.mrf.mxu0
    %v946 = vadd.f32 0.0, %v945
    %v947 = vpop.f32.mrf.mxu0
    %948 = vdwg.mxu0
    %949 = vrot.lane.b32.xlu0 %v770, 96
    %v950 = vpop.permute.xlu0 %949
    %951 = vrot.lane.b32.xlu0 %v771, 96
    %v952 = vpop.permute.xlu0 %951
    %953 = vrot.lane.b32.xlu0 %v848, 96
    %v954 = vpop.permute.xlu0 %953
    %955 = vrot.lane.b32.xlu0 %v853, 96
    %v956 = vpop.permute.xlu0 %955
    %v959 = vsel %vm774, %v950, 0
    %v961 = vsel %vm774, %v952, 0
    %963 = vmatprep.subr.mxu0 0.0
    %964 = vmatpush1.msra.mxu0 0.0
    %965 = vmatprep.subr.mxu0 0.0
    %966 = vmatpush1.msra.mxu0 0.0
    %967 = vmatprep.subr.mxu0 0.0
    %968 = vmatpush1.msra.mxu0 0.0
    %969 = vmatprep.subr.mxu0 0.0
    %970 = vmatpush1.msra.mxu0 0.0
    %971 = vmatprep.subr.mxu0 0.0
    %972 = vmatpush1.msra.mxu0 0.0
    %973 = vmatprep.subr.mxu0 0.0
    %974 = vmatpush1.msra.mxu0 0.0
    %975 = vmatprep.subr.mxu0 0.0
    %976 = vmatpush1.msra.mxu0 0.0
    %977 = vmatprep.subr.mxu0 0.0
    %978 = vmatpush1.msra.mxu0 0.0
    %979 = vmatprep.subr.mxu0 0.0
    %980 = vmatpush1.msra.mxu0 0.0
    %981 = vmatprep.subr.mxu0 0.0
    %982 = vmatpush1.msra.mxu0 0.0
    %983 = vmatprep.subr.mxu0 0.0
    %984 = vmatpush1.msra.mxu0 0.0
    %985 = vmatprep.subr.mxu0 0.0
    %986 = vmatpush1.msra.mxu0 0.0
    %987 = vmatprep.subr.mxu0 0.0
    %988 = vmatpush1.msra.mxu0 0.0
    %989 = vmatprep.subr.mxu0 0.0
    %990 = vmatpush1.msra.mxu0 0.0
    %991 = vmatprep.subr.mxu0 0.0
    %992 = vmatpush1.msra.mxu0 %v956
    %993 = vmatprep.subr.mxu0 0.0
    %994 = vmatpush1.msra.mxu0 %v954
    %995 = vmatprep.subr.mxu0 0.0
    %996 = vmatpush2.msra.mxu0 0.0
    %997 = vmatprep.subr.mxu0 0.0
    %998 = vmatpush2.msra.mxu0 0.0
    %999 = vmatprep.subr.mxu0 0.0
    %1000 = vmatpush2.msra.mxu0 0.0
    %1001 = vmatprep.subr.mxu0 0.0
    %1002 = vmatpush2.msra.mxu0 0.0
    %1003 = vmatprep.subr.mxu0 0.0
    %1004 = vmatpush2.msra.mxu0 0.0
    %1005 = vmatprep.subr.mxu0 0.0
    %1006 = vmatpush2.msra.mxu0 0.0
    %1007 = vmatprep.subr.mxu0 0.0
    %1008 = vmatpush2.msra.mxu0 0.0
    %1009 = vmatprep.subr.mxu0 0.0
    %1010 = vmatpush2.msra.mxu0 0.0
    %1011 = vmatprep.subr.mxu0 0.0
    %1012 = vmatpush2.msra.mxu0 0.0
    %1013 = vmatprep.subr.mxu0 0.0
    %1014 = vmatpush2.msra.mxu0 0.0
    %1015 = vmatprep.subr.mxu0 0.0
    %1016 = vmatpush2.msra.mxu0 0.0
    %1017 = vmatprep.subr.mxu0 0.0
    %1018 = vmatpush2.msra.mxu0 0.0
    %1019 = vmatprep.subr.mxu0 0.0
    %1020 = vmatpush2.msra.mxu0 0.0
    %1021 = vmatprep.subr.mxu0 0.0
    %1022 = vmatpush2.msra.mxu0 0.0
    %1023 = vmatprep.subr.mxu0 0.0
    %1024 = vmatpush2.msra.mxu0 0.0
    %1025 = vmatprep.subr.mxu0 0.0
    %1026 = vmatpush2.msra.mxu0 0.0
    %1027 = vmatprep.mubr.f32.mxu0 0.0
    %1028 = vmatmul.mubr.f32.gmra.mxu0 %v959
    %v1029 = vpop.f32.mrf.mxu0
    %v1030 = vadd.f32 0.0, %v1029
    %v1031 = vpop.f32.mrf.mxu0
    %1032 = vmatprep.mubr.f32.mxu0 0.0
    %1033 = vmatmul.mubr.f32.gmra.mxu0 %v961
    %v1034 = vpop.f32.mrf.mxu0
    %v1035 = vadd.f32 0.0, %v1034
    %v1036 = vpop.f32.mrf.mxu0
    %1037 = vdwg.mxu0
    %v1038 = vsel %vm774, %v770, 0
    %v1040 = vsel %vm774, %v771, 0
    %1042 = vmatprep.subr.mxu0 0.0
    %1043 = vmatpush1.msra.mxu0 0.0
    %1044 = vmatprep.subr.mxu0 0.0
    %1045 = vmatpush1.msra.mxu0 0.0
    %1046 = vmatprep.subr.mxu0 0.0
    %1047 = vmatpush1.msra.mxu0 0.0
    %1048 = vmatprep.subr.mxu0 0.0
    %1049 = vmatpush1.msra.mxu0 0.0
    %1050 = vmatprep.subr.mxu0 0.0
    %1051 = vmatpush1.msra.mxu0 0.0
    %1052 = vmatprep.subr.mxu0 0.0
    %1053 = vmatpush1.msra.mxu0 0.0
    %1054 = vmatprep.subr.mxu0 0.0
    %1055 = vmatpush1.msra.mxu0 0.0
    %1056 = vmatprep.subr.mxu0 0.0
    %1057 = vmatpush1.msra.mxu0 0.0
    %1058 = vmatprep.subr.mxu0 0.0
    %1059 = vmatpush1.msra.mxu0 0.0
    %1060 = vmatprep.subr.mxu0 0.0
    %1061 = vmatpush1.msra.mxu0 0.0
    %1062 = vmatprep.subr.mxu0 0.0
    %1063 = vmatpush1.msra.mxu0 0.0
    %1064 = vmatprep.subr.mxu0 0.0
    %1065 = vmatpush1.msra.mxu0 0.0
    %1066 = vmatprep.subr.mxu0 0.0
    %1067 = vmatpush1.msra.mxu0 0.0
    %1068 = vmatprep.subr.mxu0 0.0
    %1069 = vmatpush1.msra.mxu0 0.0
    %1070 = vmatprep.subr.mxu0 0.0
    %1071 = vmatpush1.msra.mxu0 %v853
    %1072 = vmatprep.subr.mxu0 0.0
    %1073 = vmatpush1.msra.mxu0 %v848
    %1074 = vmatprep.subr.mxu0 0.0
    %1075 = vmatpush2.msra.mxu0 0.0
    %1076 = vmatprep.subr.mxu0 0.0
    %1077 = vmatpush2.msra.mxu0 0.0
    %1078 = vmatprep.subr.mxu0 0.0
    %1079 = vmatpush2.msra.mxu0 0.0
    %1080 = vmatprep.subr.mxu0 0.0
    %1081 = vmatpush2.msra.mxu0 0.0
    %1082 = vmatprep.subr.mxu0 0.0
    %1083 = vmatpush2.msra.mxu0 0.0
    %1084 = vmatprep.subr.mxu0 0.0
    %1085 = vmatpush2.msra.mxu0 0.0
    %1086 = vmatprep.subr.mxu0 0.0
    %1087 = vmatpush2.msra.mxu0 0.0
    %1088 = vmatprep.subr.mxu0 0.0
    %1089 = vmatpush2.msra.mxu0 0.0
    %1090 = vmatprep.subr.mxu0 0.0
    %1091 = vmatpush2.msra.mxu0 0.0
    %1092 = vmatprep.subr.mxu0 0.0
    %1093 = vmatpush2.msra.mxu0 0.0
    %1094 = vmatprep.subr.mxu0 0.0
    %1095 = vmatpush2.msra.mxu0 0.0
    %1096 = vmatprep.subr.mxu0 0.0
    %1097 = vmatpush2.msra.mxu0 0.0
    %1098 = vmatprep.subr.mxu0 0.0
    %1099 = vmatpush2.msra.mxu0 0.0
    %1100 = vmatprep.subr.mxu0 0.0
    %1101 = vmatpush2.msra.mxu0 0.0
    %1102 = vmatprep.subr.mxu0 0.0
    %1103 = vmatpush2.msra.mxu0 0.0
    %1104 = vmatprep.subr.mxu0 0.0
    %1105 = vmatpush2.msra.mxu0 0.0
    %1106 = vmatprep.mubr.f32.mxu0 0.0
    %1107 = vmatmul.mubr.f32.gmra.mxu0 %v1038
    %v1108 = vpop.f32.mrf.mxu0
    %v1109 = vadd.f32 %v941, %v1108
    %v1110 = vpop.f32.mrf.mxu0
    %1111 = vmatprep.mubr.f32.mxu0 0.0
    %1112 = vmatmul.mubr.f32.gmra.mxu0 %v1040
    %v1113 = vpop.f32.mrf.mxu0
    %v1114 = vadd.f32 %v946, %v1113
    %v1115 = vpop.f32.mrf.mxu0
    %1116 = vdwg.mxu0
    %v1117 = vadd.f32 %v1109, %v1030
    %v1118 = vadd.f32 %v1114, %v1035
    %1119 = vset.pattern.permute.xlu0 48
    %1120 = vperm.xlu0 %1119, %v770
    %v1121 = vpop.permute.xlu0 %1120
    %1123 = vset.pattern.permute.xlu0 48
    %1124 = vperm.xlu0 %1123, %v771
    %v1125 = vpop.permute.xlu0 %1124
    %v1127 = vadd.f32 %v1121, %v1117
    %v1128 = vadd.f32 %v1125, %v1118
    %v1129 = vmax.f32 %v1127, 0.0
    %v1130 = vmax.f32 %v1128, 0.0
    %v1131 = vld [vmem:[#allocation5 + $0x80] sm:$0xff]
    %v1132 = vld [vmem:[#allocation5 + $0x88] sm:$0xff]
    %v1133 = vld [vmem:[#allocation5 + $0x90] sm:$0xff]
    %v1135 = vsel %vm774, %v1129, 0
    %v1138 = vsel %vm774, %v1130, 0
    %1140 = vmatprep.subr.mxu0 0.0
    %1141 = vmatpush1.msra.mxu0 0.0
    %1142 = vmatprep.subr.mxu0 0.0
    %1143 = vmatpush1.msra.mxu0 0.0
    %1144 = vmatprep.subr.mxu0 0.0
    %1145 = vmatpush1.msra.mxu0 0.0
    %1146 = vmatprep.subr.mxu0 0.0
    %1147 = vmatpush1.msra.mxu0 0.0
    %1148 = vmatprep.subr.mxu0 0.0
    %1149 = vmatpush1.msra.mxu0 0.0
    %1150 = vmatprep.subr.mxu0 0.0
    %1151 = vmatpush1.msra.mxu0 0.0
    %1152 = vmatprep.subr.mxu0 0.0
    %1153 = vmatpush1.msra.mxu0 0.0
    %1154 = vmatprep.subr.mxu0 0.0
    %1155 = vmatpush1.msra.mxu0 0.0
    %1156 = vmatprep.subr.mxu0 0.0
    %1157 = vmatpush1.msra.mxu0 0.0
    %1158 = vmatprep.subr.mxu0 0.0
    %1159 = vmatpush1.msra.mxu0 0.0
    %1160 = vmatprep.subr.mxu0 0.0
    %1161 = vmatpush1.msra.mxu0 0.0
    %1162 = vmatprep.subr.mxu0 0.0
    %1163 = vmatpush1.msra.mxu0 0.0
    %1164 = vmatprep.subr.mxu0 0.0
    %1165 = vmatpush1.msra.mxu0 0.0
    %1166 = vmatprep.subr.mxu0 0.0
    %1167 = vmatpush1.msra.mxu0 0.0
    %1168 = vmatprep.subr.mxu0 0.0
    %1169 = vmatpush1.msra.mxu0 %v1133
    %1170 = vmatprep.subr.mxu0 0.0
    %1171 = vmatpush1.msra.mxu0 %v1132
    %1172 = vmatprep.subr.mxu0 0.0
    %1173 = vmatpush2.msra.mxu0 0.0
    %1174 = vmatprep.subr.mxu0 0.0
    %1175 = vmatpush2.msra.mxu0 0.0
    %1176 = vmatprep.subr.mxu0 0.0
    %1177 = vmatpush2.msra.mxu0 0.0
    %1178 = vmatprep.subr.mxu0 0.0
    %1179 = vmatpush2.msra.mxu0 0.0
    %1180 = vmatprep.subr.mxu0 0.0
    %1181 = vmatpush2.msra.mxu0 0.0
    %1182 = vmatprep.subr.mxu0 0.0
    %1183 = vmatpush2.msra.mxu0 0.0
    %1184 = vmatprep.subr.mxu0 0.0
    %1185 = vmatpush2.msra.mxu0 0.0
    %1186 = vmatprep.subr.mxu0 0.0
    %1187 = vmatpush2.msra.mxu0 0.0
    %1188 = vmatprep.subr.mxu0 0.0
    %1189 = vmatpush2.msra.mxu0 0.0
    %1190 = vmatprep.subr.mxu0 0.0
    %1191 = vmatpush2.msra.mxu0 0.0
    %1192 = vmatprep.subr.mxu0 0.0
    %1193 = vmatpush2.msra.mxu0 0.0
    %1194 = vmatprep.subr.mxu0 0.0
    %1195 = vmatpush2.msra.mxu0 0.0
    %1196 = vmatprep.subr.mxu0 0.0
    %1197 = vmatpush2.msra.mxu0 0.0
    %1198 = vmatprep.subr.mxu0 0.0
    %1199 = vmatpush2.msra.mxu0 0.0
    %1200 = vmatprep.subr.mxu0 0.0
    %1201 = vmatpush2.msra.mxu0 0.0
    %1202 = vmatprep.subr.mxu0 0.0
    %1203 = vmatpush2.msra.mxu0 0.0
    %1204 = vmatprep.mubr.f32.mxu0 0.0
    %1205 = vmatmul.mubr.f32.gmra.mxu0 %v1135
    %v1206 = vpop.f32.mrf.mxu0
    %v1207 = vadd.f32 0.0, %v1206
    %v1208 = vpop.f32.mrf.mxu0
    %1209 = vmatprep.mubr.f32.mxu0 0.0
    %1210 = vmatmul.mubr.f32.gmra.mxu0 %v1138
    %v1211 = vpop.f32.mrf.mxu0
    %v1212 = vadd.f32 0.0, %v1211
    %v1213 = vpop.f32.mrf.mxu0
    %1214 = vdwg.mxu0
    %1216 = vrot.lane.b32.xlu0 %v1131, 112
    %v1217 = vpop.permute.xlu0 %1216
    %1220 = vrot.lane.b32.xlu0 %v1207, 96
    %v1221 = vpop.permute.xlu0 %1220
    %1222 = vrot.lane.b32.xlu0 %v1212, 96
    %v1223 = vpop.permute.xlu0 %1222
    %v1226 = vsel %vm774, %v1217, 0
    %1228 = vmatprep.subr.mxu0 0.0
    %1229 = vmatpush1.msra.mxu0 0.0
    %1230 = vmatprep.subr.mxu0 0.0
    %1231 = vmatpush1.msra.mxu0 0.0
    %1232 = vmatprep.subr.mxu0 0.0
    %1233 = vmatpush1.msra.mxu0 0.0
    %1234 = vmatprep.subr.mxu0 0.0
    %1235 = vmatpush1.msra.mxu0 0.0
    %1236 = vmatprep.subr.mxu0 0.0
    %1237 = vmatpush1.msra.mxu0 0.0
    %1238 = vmatprep.subr.mxu0 0.0
    %1239 = vmatpush1.msra.mxu0 0.0
    %1240 = vmatprep.subr.mxu0 0.0
    %1241 = vmatpush1.msra.mxu0 0.0
    %1242 = vmatprep.subr.mxu0 0.0
    %1243 = vmatpush1.msra.mxu0 0.0
    %1244 = vmatprep.subr.mxu0 0.0
    %1245 = vmatpush1.msra.mxu0 0.0
    %1246 = vmatprep.subr.mxu0 0.0
    %1247 = vmatpush1.msra.mxu0 0.0
    %1248 = vmatprep.subr.mxu0 0.0
    %1249 = vmatpush1.msra.mxu0 0.0
    %1250 = vmatprep.subr.mxu0 0.0
    %1251 = vmatpush1.msra.mxu0 0.0
    %1252 = vmatprep.subr.mxu0 0.0
    %1253 = vmatpush1.msra.mxu0 0.0
    %1254 = vmatprep.subr.mxu0 0.0
    %1255 = vmatpush1.msra.mxu0 0.0
    %1256 = vmatprep.subr.mxu0 0.0
    %1257 = vmatpush1.msra.mxu0 %v1223
    %1258 = vmatprep.subr.mxu0 0.0
    %1259 = vmatpush1.msra.mxu0 %v1221
    %1260 = vmatprep.subr.mxu0 0.0
    %1261 = vmatpush2.msra.mxu0 0.0
    %1262 = vmatprep.subr.mxu0 0.0
    %1263 = vmatpush2.msra.mxu0 0.0
    %1264 = vmatprep.subr.mxu0 0.0
    %1265 = vmatpush2.msra.mxu0 0.0
    %1266 = vmatprep.subr.mxu0 0.0
    %1267 = vmatpush2.msra.mxu0 0.0
    %1268 = vmatprep.subr.mxu0 0.0
    %1269 = vmatpush2.msra.mxu0 0.0
    %1270 = vmatprep.subr.mxu0 0.0
    %1271 = vmatpush2.msra.mxu0 0.0
    %1272 = vmatprep.subr.mxu0 0.0
    %1273 = vmatpush2.msra.mxu0 0.0
    %1274 = vmatprep.subr.mxu0 0.0
    %1275 = vmatpush2.msra.mxu0 0.0
    %1276 = vmatprep.subr.mxu0 0.0
    %1277 = vmatpush2.msra.mxu0 0.0
    %1278 = vmatprep.subr.mxu0 0.0
    %1279 = vmatpush2.msra.mxu0 0.0
    %1280 = vmatprep.subr.mxu0 0.0
    %1281 = vmatpush2.msra.mxu0 0.0
    %1282 = vmatprep.subr.mxu0 0.0
    %1283 = vmatpush2.msra.mxu0 0.0
    %1284 = vmatprep.subr.mxu0 0.0
    %1285 = vmatpush2.msra.mxu0 0.0
    %1286 = vmatprep.subr.mxu0 0.0
    %1287 = vmatpush2.msra.mxu0 0.0
    %1288 = vmatprep.subr.mxu0 0.0
    %1289 = vmatpush2.msra.mxu0 0.0
    %1290 = vmatprep.subr.mxu0 0.0
    %1291 = vmatpush2.msra.mxu0 0.0
    %1292 = vmatprep.mubr.f32.mxu0 0.0
    %1293 = vmatmul.mubr.f32.gmra.mxu0 %v1226
    %v1294 = vpop.f32.mrf.mxu0
    %v1295 = vadd.f32 0.0, %v1294
    %v1296 = vpop.f32.mrf.mxu0
    %1297 = vdwg.mxu0
    %1298 = vrot.lane.b32.xlu0 %v1131, 80
    %v1299 = vpop.permute.xlu0 %1298
    %1300 = vrot.lane.b32.xlu0 %v1207, 32
    %v1301 = vpop.permute.xlu0 %1300
    %1302 = vrot.lane.b32.xlu0 %v1212, 32
    %v1303 = vpop.permute.xlu0 %1302
    %v1306 = vsel %vm774, %v1299, 0
    %1308 = vmatprep.subr.mxu0 0.0
    %1309 = vmatpush1.msra.mxu0 0.0
    %1310 = vmatprep.subr.mxu0 0.0
    %1311 = vmatpush1.msra.mxu0 0.0
    %1312 = vmatprep.subr.mxu0 0.0
    %1313 = vmatpush1.msra.mxu0 0.0
    %1314 = vmatprep.subr.mxu0 0.0
    %1315 = vmatpush1.msra.mxu0 0.0
    %1316 = vmatprep.subr.mxu0 0.0
    %1317 = vmatpush1.msra.mxu0 0.0
    %1318 = vmatprep.subr.mxu0 0.0
    %1319 = vmatpush1.msra.mxu0 0.0
    %1320 = vmatprep.subr.mxu0 0.0
    %1321 = vmatpush1.msra.mxu0 0.0
    %1322 = vmatprep.subr.mxu0 0.0
    %1323 = vmatpush1.msra.mxu0 0.0
    %1324 = vmatprep.subr.mxu0 0.0
    %1325 = vmatpush1.msra.mxu0 0.0
    %1326 = vmatprep.subr.mxu0 0.0
    %1327 = vmatpush1.msra.mxu0 0.0
    %1328 = vmatprep.subr.mxu0 0.0
    %1329 = vmatpush1.msra.mxu0 0.0
    %1330 = vmatprep.subr.mxu0 0.0
    %1331 = vmatpush1.msra.mxu0 0.0
    %1332 = vmatprep.subr.mxu0 0.0
    %1333 = vmatpush1.msra.mxu0 0.0
    %1334 = vmatprep.subr.mxu0 0.0
    %1335 = vmatpush1.msra.mxu0 0.0
    %1336 = vmatprep.subr.mxu0 0.0
    %1337 = vmatpush1.msra.mxu0 %v1303
    %1338 = vmatprep.subr.mxu0 0.0
    %1339 = vmatpush1.msra.mxu0 %v1301
    %1340 = vmatprep.subr.mxu0 0.0
    %1341 = vmatpush2.msra.mxu0 0.0
    %1342 = vmatprep.subr.mxu0 0.0
    %1343 = vmatpush2.msra.mxu0 0.0
    %1344 = vmatprep.subr.mxu0 0.0
    %1345 = vmatpush2.msra.mxu0 0.0
    %1346 = vmatprep.subr.mxu0 0.0
    %1347 = vmatpush2.msra.mxu0 0.0
    %1348 = vmatprep.subr.mxu0 0.0
    %1349 = vmatpush2.msra.mxu0 0.0
    %1350 = vmatprep.subr.mxu0 0.0
    %1351 = vmatpush2.msra.mxu0 0.0
    %1352 = vmatprep.subr.mxu0 0.0
    %1353 = vmatpush2.msra.mxu0 0.0
    %1354 = vmatprep.subr.mxu0 0.0
    %1355 = vmatpush2.msra.mxu0 0.0
    %1356 = vmatprep.subr.mxu0 0.0
    %1357 = vmatpush2.msra.mxu0 0.0
    %1358 = vmatprep.subr.mxu0 0.0
    %1359 = vmatpush2.msra.mxu0 0.0
    %1360 = vmatprep.subr.mxu0 0.0
    %1361 = vmatpush2.msra.mxu0 0.0
    %1362 = vmatprep.subr.mxu0 0.0
    %1363 = vmatpush2.msra.mxu0 0.0
    %1364 = vmatprep.subr.mxu0 0.0
    %1365 = vmatpush2.msra.mxu0 0.0
    %1366 = vmatprep.subr.mxu0 0.0
    %1367 = vmatpush2.msra.mxu0 0.0
    %1368 = vmatprep.subr.mxu0 0.0
    %1369 = vmatpush2.msra.mxu0 0.0
    %1370 = vmatprep.subr.mxu0 0.0
    %1371 = vmatpush2.msra.mxu0 0.0
    %1372 = vmatprep.mubr.f32.mxu0 0.0
    %1373 = vmatmul.mubr.f32.gmra.mxu0 %v1306
    %v1374 = vpop.f32.mrf.mxu0
    %v1375 = vadd.f32 0.0, %v1374
    %v1376 = vpop.f32.mrf.mxu0
    %1377 = vdwg.mxu0
    %v1378 = vsel %vm774, %v1131, 0
    %1380 = vmatprep.subr.mxu0 0.0
    %1381 = vmatpush1.msra.mxu0 0.0
    %1382 = vmatprep.subr.mxu0 0.0
    %1383 = vmatpush1.msra.mxu0 0.0
    %1384 = vmatprep.subr.mxu0 0.0
    %1385 = vmatpush1.msra.mxu0 0.0
    %1386 = vmatprep.subr.mxu0 0.0
    %1387 = vmatpush1.msra.mxu0 0.0
    %1388 = vmatprep.subr.mxu0 0.0
    %1389 = vmatpush1.msra.mxu0 0.0
    %1390 = vmatprep.subr.mxu0 0.0
    %1391 = vmatpush1.msra.mxu0 0.0
    %1392 = vmatprep.subr.mxu0 0.0
    %1393 = vmatpush1.msra.mxu0 0.0
    %1394 = vmatprep.subr.mxu0 0.0
    %1395 = vmatpush1.msra.mxu0 0.0
    %1396 = vmatprep.subr.mxu0 0.0
    %1397 = vmatpush1.msra.mxu0 0.0
    %1398 = vmatprep.subr.mxu0 0.0
    %1399 = vmatpush1.msra.mxu0 0.0
    %1400 = vmatprep.subr.mxu0 0.0
    %1401 = vmatpush1.msra.mxu0 0.0
    %1402 = vmatprep.subr.mxu0 0.0
    %1403 = vmatpush1.msra.mxu0 0.0
    %1404 = vmatprep.subr.mxu0 0.0
    %1405 = vmatpush1.msra.mxu0 0.0
    %1406 = vmatprep.subr.mxu0 0.0
    %1407 = vmatpush1.msra.mxu0 0.0
    %1408 = vmatprep.subr.mxu0 0.0
    %1409 = vmatpush1.msra.mxu0 %v1212
    %1410 = vmatprep.subr.mxu0 0.0
    %1411 = vmatpush1.msra.mxu0 %v1207
    %1412 = vmatprep.subr.mxu0 0.0
    %1413 = vmatpush2.msra.mxu0 0.0
    %1414 = vmatprep.subr.mxu0 0.0
    %1415 = vmatpush2.msra.mxu0 0.0
    %1416 = vmatprep.subr.mxu0 0.0
    %1417 = vmatpush2.msra.mxu0 0.0
    %1418 = vmatprep.subr.mxu0 0.0
    %1419 = vmatpush2.msra.mxu0 0.0
    %1420 = vmatprep.subr.mxu0 0.0
    %1421 = vmatpush2.msra.mxu0 0.0
    %1422 = vmatprep.subr.mxu0 0.0
    %1423 = vmatpush2.msra.mxu0 0.0
    %1424 = vmatprep.subr.mxu0 0.0
    %1425 = vmatpush2.msra.mxu0 0.0
    %1426 = vmatprep.subr.mxu0 0.0
    %1427 = vmatpush2.msra.mxu0 0.0
    %1428 = vmatprep.subr.mxu0 0.0
    %1429 = vmatpush2.msra.mxu0 0.0
    %1430 = vmatprep.subr.mxu0 0.0
    %1431 = vmatpush2.msra.mxu0 0.0
    %1432 = vmatprep.subr.mxu0 0.0
    %1433 = vmatpush2.msra.mxu0 0.0
    %1434 = vmatprep.subr.mxu0 0.0
    %1435 = vmatpush2.msra.mxu0 0.0
    %1436 = vmatprep.subr.mxu0 0.0
    %1437 = vmatpush2.msra.mxu0 0.0
    %1438 = vmatprep.subr.mxu0 0.0
    %1439 = vmatpush2.msra.mxu0 0.0
    %1440 = vmatprep.subr.mxu0 0.0
    %1441 = vmatpush2.msra.mxu0 0.0
    %1442 = vmatprep.subr.mxu0 0.0
    %1443 = vmatpush2.msra.mxu0 0.0
    %1444 = vmatprep.mubr.f32.mxu0 0.0
    %1445 = vmatmul.mubr.f32.gmra.mxu0 %v1378
    %v1446 = vpop.f32.mrf.mxu0
    %v1447 = vadd.f32 %v1295, %v1446
    %v1448 = vpop.f32.mrf.mxu0
    %1449 = vdwg.mxu0
    %1450 = vrot.lane.b32.xlu0 %v1131, 96
    %v1451 = vpop.permute.xlu0 %1450
    %1452 = vrot.lane.b32.xlu0 %v1207, 64
    %v1453 = vpop.permute.xlu0 %1452
    %1454 = vrot.lane.b32.xlu0 %v1212, 64
    %v1455 = vpop.permute.xlu0 %1454
    %v1458 = vsel %vm774, %v1451, 0
    %1460 = vmatprep.subr.mxu0 0.0
    %1461 = vmatpush1.msra.mxu0 0.0
    %1462 = vmatprep.subr.mxu0 0.0
    %1463 = vmatpush1.msra.mxu0 0.0
    %1464 = vmatprep.subr.mxu0 0.0
    %1465 = vmatpush1.msra.mxu0 0.0
    %1466 = vmatprep.subr.mxu0 0.0
    %1467 = vmatpush1.msra.mxu0 0.0
    %1468 = vmatprep.subr.mxu0 0.0
    %1469 = vmatpush1.msra.mxu0 0.0
    %1470 = vmatprep.subr.mxu0 0.0
    %1471 = vmatpush1.msra.mxu0 0.0
    %1472 = vmatprep.subr.mxu0 0.0
    %1473 = vmatpush1.msra.mxu0 0.0
    %1474 = vmatprep.subr.mxu0 0.0
    %1475 = vmatpush1.msra.mxu0 0.0
    %1476 = vmatprep.subr.mxu0 0.0
    %1477 = vmatpush1.msra.mxu0 0.0
    %1478 = vmatprep.subr.mxu0 0.0
    %1479 = vmatpush1.msra.mxu0 0.0
    %1480 = vmatprep.subr.mxu0 0.0
    %1481 = vmatpush1.msra.mxu0 0.0
    %1482 = vmatprep.subr.mxu0 0.0
    %1483 = vmatpush1.msra.mxu0 0.0
    %1484 = vmatprep.subr.mxu0 0.0
    %1485 = vmatpush1.msra.mxu0 0.0
    %1486 = vmatprep.subr.mxu0 0.0
    %1487 = vmatpush1.msra.mxu0 0.0
    %1488 = vmatprep.subr.mxu0 0.0
    %1489 = vmatpush1.msra.mxu0 %v1455
    %1490 = vmatprep.subr.mxu0 0.0
    %1491 = vmatpush1.msra.mxu0 %v1453
    %1492 = vmatprep.subr.mxu0 0.0
    %1493 = vmatpush2.msra.mxu0 0.0
    %1494 = vmatprep.subr.mxu0 0.0
    %1495 = vmatpush2.msra.mxu0 0.0
    %1496 = vmatprep.subr.mxu0 0.0
    %1497 = vmatpush2.msra.mxu0 0.0
    %1498 = vmatprep.subr.mxu0 0.0
    %1499 = vmatpush2.msra.mxu0 0.0
    %1500 = vmatprep.subr.mxu0 0.0
    %1501 = vmatpush2.msra.mxu0 0.0
    %1502 = vmatprep.subr.mxu0 0.0
    %1503 = vmatpush2.msra.mxu0 0.0
    %1504 = vmatprep.subr.mxu0 0.0
    %1505 = vmatpush2.msra.mxu0 0.0
    %1506 = vmatprep.subr.mxu0 0.0
    %1507 = vmatpush2.msra.mxu0 0.0
    %1508 = vmatprep.subr.mxu0 0.0
    %1509 = vmatpush2.msra.mxu0 0.0
    %1510 = vmatprep.subr.mxu0 0.0
    %1511 = vmatpush2.msra.mxu0 0.0
    %1512 = vmatprep.subr.mxu0 0.0
    %1513 = vmatpush2.msra.mxu0 0.0
    %1514 = vmatprep.subr.mxu0 0.0
    %1515 = vmatpush2.msra.mxu0 0.0
    %1516 = vmatprep.subr.mxu0 0.0
    %1517 = vmatpush2.msra.mxu0 0.0
    %1518 = vmatprep.subr.mxu0 0.0
    %1519 = vmatpush2.msra.mxu0 0.0
    %1520 = vmatprep.subr.mxu0 0.0
    %1521 = vmatpush2.msra.mxu0 0.0
    %1522 = vmatprep.subr.mxu0 0.0
    %1523 = vmatpush2.msra.mxu0 0.0
    %1524 = vmatprep.mubr.f32.mxu0 0.0
    %1525 = vmatmul.mubr.f32.gmra.mxu0 %v1458
    %v1526 = vpop.f32.mrf.mxu0
    %v1527 = vadd.f32 %v1375, %v1526
    %v1528 = vpop.f32.mrf.mxu0
    %1529 = vdwg.mxu0
    %v1530 = vadd.f32 %v1447, %v1527
    %1531 = vset.pattern.permute.xlu0 64
    %1532 = vperm.xlu0 %1531, %v1131
    %v1533 = vpop.permute.xlu0 %1532
    %v1535 = vadd.f32 %v1533, %v1530
    %v1536 = vmax.f32 %v1535, 0.0
    %v1537 = vld [vmem:[#allocation5 + $0x98] sm:$0xf]
    %v1538 = vld [vmem:[#allocation5 + $0xa0] sm:$0xff]
    %v1539 = vld [vmem:[#allocation5 + $0xa8] sm:$0xff]
    %v1540 = vld [vmem:[#allocation5 + $0xb0] sm:$0xff]
    %v1541 = vld [vmem:[#allocation5 + $0xb8] sm:$0xff]
    %v1543 = vsel %vm107, %v1536, 0
    %1545 = vmatprep.subr.mxu0 0.0
    %1546 = vmatpush1.msra.mxu0 0.0
    %1547 = vmatprep.subr.mxu0 0.0
    %1548 = vmatpush1.msra.mxu0 0.0
    %1549 = vmatprep.subr.mxu0 0.0
    %1550 = vmatpush1.msra.mxu0 0.0
    %1551 = vmatprep.subr.mxu0 0.0
    %1552 = vmatpush1.msra.mxu0 0.0
    %1553 = vmatprep.subr.mxu0 0.0
    %1554 = vmatpush1.msra.mxu0 0.0
    %1555 = vmatprep.subr.mxu0 0.0
    %1556 = vmatpush1.msra.mxu0 0.0
    %1557 = vmatprep.subr.mxu0 0.0
    %1558 = vmatpush1.msra.mxu0 0.0
    %1559 = vmatprep.subr.mxu0 0.0
    %1560 = vmatpush1.msra.mxu0 0.0
    %1561 = vmatprep.subr.mxu0 0.0
    %1562 = vmatpush1.msra.mxu0 0.0
    %1563 = vmatprep.subr.mxu0 0.0
    %1564 = vmatpush1.msra.mxu0 0.0
    %1565 = vmatprep.subr.mxu0 0.0
    %1566 = vmatpush1.msra.mxu0 0.0
    %1567 = vmatprep.subr.mxu0 0.0
    %1568 = vmatpush1.msra.mxu0 0.0
    %1569 = vmatprep.subr.mxu0 0.0
    %1570 = vmatpush1.msra.mxu0 %v1541
    %1571 = vmatprep.subr.mxu0 0.0
    %1572 = vmatpush1.msra.mxu0 %v1540
    %1573 = vmatprep.subr.mxu0 0.0
    %1574 = vmatpush1.msra.mxu0 %v1539
    %1575 = vmatprep.subr.mxu0 0.0
    %1576 = vmatpush1.msra.mxu0 %v1538
    %1577 = vmatprep.subr.mxu0 0.0
    %1578 = vmatpush2.msra.mxu0 0.0
    %1579 = vmatprep.subr.mxu0 0.0
    %1580 = vmatpush2.msra.mxu0 0.0
    %1581 = vmatprep.subr.mxu0 0.0
    %1582 = vmatpush2.msra.mxu0 0.0
    %1583 = vmatprep.subr.mxu0 0.0
    %1584 = vmatpush2.msra.mxu0 0.0
    %1585 = vmatprep.subr.mxu0 0.0
    %1586 = vmatpush2.msra.mxu0 0.0
    %1587 = vmatprep.subr.mxu0 0.0
    %1588 = vmatpush2.msra.mxu0 0.0
    %1589 = vmatprep.subr.mxu0 0.0
    %1590 = vmatpush2.msra.mxu0 0.0
    %1591 = vmatprep.subr.mxu0 0.0
    %1592 = vmatpush2.msra.mxu0 0.0
    %1593 = vmatprep.subr.mxu0 0.0
    %1594 = vmatpush2.msra.mxu0 0.0
    %1595 = vmatprep.subr.mxu0 0.0
    %1596 = vmatpush2.msra.mxu0 0.0
    %1597 = vmatprep.subr.mxu0 0.0
    %1598 = vmatpush2.msra.mxu0 0.0
    %1599 = vmatprep.subr.mxu0 0.0
    %1600 = vmatpush2.msra.mxu0 0.0
    %1601 = vmatprep.subr.mxu0 0.0
    %1602 = vmatpush2.msra.mxu0 0.0
    %1603 = vmatprep.subr.mxu0 0.0
    %1604 = vmatpush2.msra.mxu0 0.0
    %1605 = vmatprep.subr.mxu0 0.0
    %1606 = vmatpush2.msra.mxu0 0.0
    %1607 = vmatprep.subr.mxu0 0.0
    %1608 = vmatpush2.msra.mxu0 0.0
    %1609 = vmatprep.mubr.f32.mxu0 0.0
    %1610 = vmatmul.mubr.f32.gmra.mxu0 %v1543
    %v1611 = vpop.f32.mrf.mxu0
    %v1612 = vadd.f32 0.0, %v1611
    %v1613 = vpop.f32.mrf.mxu0
    %1614 = vdwg.mxu0
    %1616 = vrot.lane.b32.xlu0 %v1537, 120
    %v1617 = vpop.permute.xlu0 %1616
    %1619 = vrot.lane.b32.xlu0 %v1612, 96
    %v1620 = vpop.permute.xlu0 %1619
    %v1622 = vsel %vm511, %v1617, 0
    %1624 = vmatprep.subr.mxu0 0.0
    %1625 = vmatpush1.msra.mxu0 0.0
    %1626 = vmatprep.subr.mxu0 0.0
    %1627 = vmatpush1.msra.mxu0 0.0
    %1628 = vmatprep.subr.mxu0 0.0
    %1629 = vmatpush1.msra.mxu0 0.0
    %1630 = vmatprep.subr.mxu0 0.0
    %1631 = vmatpush1.msra.mxu0 0.0
    %1632 = vmatprep.subr.mxu0 0.0
    %1633 = vmatpush1.msra.mxu0 0.0
    %1634 = vmatprep.subr.mxu0 0.0
    %1635 = vmatpush1.msra.mxu0 0.0
    %1636 = vmatprep.subr.mxu0 0.0
    %1637 = vmatpush1.msra.mxu0 0.0
    %1638 = vmatprep.subr.mxu0 0.0
    %1639 = vmatpush1.msra.mxu0 0.0
    %1640 = vmatprep.subr.mxu0 0.0
    %1641 = vmatpush1.msra.mxu0 0.0
    %1642 = vmatprep.subr.mxu0 0.0
    %1643 = vmatpush1.msra.mxu0 0.0
    %1644 = vmatprep.subr.mxu0 0.0
    %1645 = vmatpush1.msra.mxu0 0.0
    %1646 = vmatprep.subr.mxu0 0.0
    %1647 = vmatpush1.msra.mxu0 0.0
    %1648 = vmatprep.subr.mxu0 0.0
    %1649 = vmatpush1.msra.mxu0 0.0
    %1650 = vmatprep.subr.mxu0 0.0
    %1651 = vmatpush1.msra.mxu0 0.0
    %1652 = vmatprep.subr.mxu0 0.0
    %1653 = vmatpush1.msra.mxu0 0.0
    %1654 = vmatprep.subr.mxu0 0.0
    %1655 = vmatpush1.msra.mxu0 %v1620
    %1656 = vmatprep.subr.mxu0 0.0
    %1657 = vmatpush2.msra.mxu0 0.0
    %1658 = vmatprep.subr.mxu0 0.0
    %1659 = vmatpush2.msra.mxu0 0.0
    %1660 = vmatprep.subr.mxu0 0.0
    %1661 = vmatpush2.msra.mxu0 0.0
    %1662 = vmatprep.subr.mxu0 0.0
    %1663 = vmatpush2.msra.mxu0 0.0
    %1664 = vmatprep.subr.mxu0 0.0
    %1665 = vmatpush2.msra.mxu0 0.0
    %1666 = vmatprep.subr.mxu0 0.0
    %1667 = vmatpush2.msra.mxu0 0.0
    %1668 = vmatprep.subr.mxu0 0.0
    %1669 = vmatpush2.msra.mxu0 0.0
    %1670 = vmatprep.subr.mxu0 0.0
    %1671 = vmatpush2.msra.mxu0 0.0
    %1672 = vmatprep.subr.mxu0 0.0
    %1673 = vmatpush2.msra.mxu0 0.0
    %1674 = vmatprep.subr.mxu0 0.0
    %1675 = vmatpush2.msra.mxu0 0.0
    %1676 = vmatprep.subr.mxu0 0.0
    %1677 = vmatpush2.msra.mxu0 0.0
    %1678 = vmatprep.subr.mxu0 0.0
    %1679 = vmatpush2.msra.mxu0 0.0
    %1680 = vmatprep.subr.mxu0 0.0
    %1681 = vmatpush2.msra.mxu0 0.0
    %1682 = vmatprep.subr.mxu0 0.0
    %1683 = vmatpush2.msra.mxu0 0.0
    %1684 = vmatprep.subr.mxu0 0.0
    %1685 = vmatpush2.msra.mxu0 0.0
    %1686 = vmatprep.subr.mxu0 0.0
    %1687 = vmatpush2.msra.mxu0 0.0
    %1688 = vmatprep.mubr.f32.mxu0 0.0
    %1689 = vmatmul.mubr.f32.gmra.mxu0 %v1622
    %v1690 = vpop.f32.mrf.mxu0
    %v1691 = vadd.f32 0.0, %v1690
    %v1692 = vpop.f32.mrf.mxu0
    %1693 = vdwg.mxu0
    %1694 = vrot.lane.b32.xlu0 %v1537, 112
    %v1695 = vpop.permute.xlu0 %1694
    %1696 = vrot.lane.b32.xlu0 %v1612, 64
    %v1697 = vpop.permute.xlu0 %1696
    %v1699 = vsel %vm511, %v1695, 0
    %1701 = vmatprep.subr.mxu0 0.0
    %1702 = vmatpush1.msra.mxu0 0.0
    %1703 = vmatprep.subr.mxu0 0.0
    %1704 = vmatpush1.msra.mxu0 0.0
    %1705 = vmatprep.subr.mxu0 0.0
    %1706 = vmatpush1.msra.mxu0 0.0
    %1707 = vmatprep.subr.mxu0 0.0
    %1708 = vmatpush1.msra.mxu0 0.0
    %1709 = vmatprep.subr.mxu0 0.0
    %1710 = vmatpush1.msra.mxu0 0.0
    %1711 = vmatprep.subr.mxu0 0.0
    %1712 = vmatpush1.msra.mxu0 0.0
    %1713 = vmatprep.subr.mxu0 0.0
    %1714 = vmatpush1.msra.mxu0 0.0
    %1715 = vmatprep.subr.mxu0 0.0
    %1716 = vmatpush1.msra.mxu0 0.0
    %1717 = vmatprep.subr.mxu0 0.0
    %1718 = vmatpush1.msra.mxu0 0.0
    %1719 = vmatprep.subr.mxu0 0.0
    %1720 = vmatpush1.msra.mxu0 0.0
    %1721 = vmatprep.subr.mxu0 0.0
    %1722 = vmatpush1.msra.mxu0 0.0
    %1723 = vmatprep.subr.mxu0 0.0
    %1724 = vmatpush1.msra.mxu0 0.0
    %1725 = vmatprep.subr.mxu0 0.0
    %1726 = vmatpush1.msra.mxu0 0.0
    %1727 = vmatprep.subr.mxu0 0.0
    %1728 = vmatpush1.msra.mxu0 0.0
    %1729 = vmatprep.subr.mxu0 0.0
    %1730 = vmatpush1.msra.mxu0 0.0
    %1731 = vmatprep.subr.mxu0 0.0
    %1732 = vmatpush1.msra.mxu0 %v1697
    %1733 = vmatprep.subr.mxu0 0.0
    %1734 = vmatpush2.msra.mxu0 0.0
    %1735 = vmatprep.subr.mxu0 0.0
    %1736 = vmatpush2.msra.mxu0 0.0
    %1737 = vmatprep.subr.mxu0 0.0
    %1738 = vmatpush2.msra.mxu0 0.0
    %1739 = vmatprep.subr.mxu0 0.0
    %1740 = vmatpush2.msra.mxu0 0.0
    %1741 = vmatprep.subr.mxu0 0.0
    %1742 = vmatpush2.msra.mxu0 0.0
    %1743 = vmatprep.subr.mxu0 0.0
    %1744 = vmatpush2.msra.mxu0 0.0
    %1745 = vmatprep.subr.mxu0 0.0
    %1746 = vmatpush2.msra.mxu0 0.0
    %1747 = vmatprep.subr.mxu0 0.0
    %1748 = vmatpush2.msra.mxu0 0.0
    %1749 = vmatprep.subr.mxu0 0.0
    %1750 = vmatpush2.msra.mxu0 0.0
    %1751 = vmatprep.subr.mxu0 0.0
    %1752 = vmatpush2.msra.mxu0 0.0
    %1753 = vmatprep.subr.mxu0 0.0
    %1754 = vmatpush2.msra.mxu0 0.0
    %1755 = vmatprep.subr.mxu0 0.0
    %1756 = vmatpush2.msra.mxu0 0.0
    %1757 = vmatprep.subr.mxu0 0.0
    %1758 = vmatpush2.msra.mxu0 0.0
    %1759 = vmatprep.subr.mxu0 0.0
    %1760 = vmatpush2.msra.mxu0 0.0
    %1761 = vmatprep.subr.mxu0 0.0
    %1762 = vmatpush2.msra.mxu0 0.0
    %1763 = vmatprep.subr.mxu0 0.0
    %1764 = vmatpush2.msra.mxu0 0.0
    %1765 = vmatprep.mubr.f32.mxu0 0.0
    %1766 = vmatmul.mubr.f32.gmra.mxu0 %v1699
    %v1767 = vpop.f32.mrf.mxu0
    %v1768 = vadd.f32 0.0, %v1767
    %v1769 = vpop.f32.mrf.mxu0
    %1770 = vdwg.mxu0
    %v1771 = vsel %vm511, %v1537, 0
    %1773 = vmatprep.subr.mxu0 0.0
    %1774 = vmatpush1.msra.mxu0 0.0
    %1775 = vmatprep.subr.mxu0 0.0
    %1776 = vmatpush1.msra.mxu0 0.0
    %1777 = vmatprep.subr.mxu0 0.0
    %1778 = vmatpush1.msra.mxu0 0.0
    %1779 = vmatprep.subr.mxu0 0.0
    %1780 = vmatpush1.msra.mxu0 0.0
    %1781 = vmatprep.subr.mxu0 0.0
    %1782 = vmatpush1.msra.mxu0 0.0
    %1783 = vmatprep.subr.mxu0 0.0
    %1784 = vmatpush1.msra.mxu0 0.0
    %1785 = vmatprep.subr.mxu0 0.0
    %1786 = vmatpush1.msra.mxu0 0.0
    %1787 = vmatprep.subr.mxu0 0.0
    %1788 = vmatpush1.msra.mxu0 0.0
    %1789 = vmatprep.subr.mxu0 0.0
    %1790 = vmatpush1.msra.mxu0 0.0
    %1791 = vmatprep.subr.mxu0 0.0
    %1792 = vmatpush1.msra.mxu0 0.0
    %1793 = vmatprep.subr.mxu0 0.0
    %1794 = vmatpush1.msra.mxu0 0.0
    %1795 = vmatprep.subr.mxu0 0.0
    %1796 = vmatpush1.msra.mxu0 0.0
    %1797 = vmatprep.subr.mxu0 0.0
    %1798 = vmatpush1.msra.mxu0 0.0
    %1799 = vmatprep.subr.mxu0 0.0
    %1800 = vmatpush1.msra.mxu0 0.0
    %1801 = vmatprep.subr.mxu0 0.0
    %1802 = vmatpush1.msra.mxu0 0.0
    %1803 = vmatprep.subr.mxu0 0.0
    %1804 = vmatpush1.msra.mxu0 %v1612
    %1805 = vmatprep.subr.mxu0 0.0
    %1806 = vmatpush2.msra.mxu0 0.0
    %1807 = vmatprep.subr.mxu0 0.0
    %1808 = vmatpush2.msra.mxu0 0.0
    %1809 = vmatprep.subr.mxu0 0.0
    %1810 = vmatpush2.msra.mxu0 0.0
    %1811 = vmatprep.subr.mxu0 0.0
    %1812 = vmatpush2.msra.mxu0 0.0
    %1813 = vmatprep.subr.mxu0 0.0
    %1814 = vmatpush2.msra.mxu0 0.0
    %1815 = vmatprep.subr.mxu0 0.0
    %1816 = vmatpush2.msra.mxu0 0.0
    %1817 = vmatprep.subr.mxu0 0.0
    %1818 = vmatpush2.msra.mxu0 0.0
    %1819 = vmatprep.subr.mxu0 0.0
    %1820 = vmatpush2.msra.mxu0 0.0
    %1821 = vmatprep.subr.mxu0 0.0
    %1822 = vmatpush2.msra.mxu0 0.0
    %1823 = vmatprep.subr.mxu0 0.0
    %1824 = vmatpush2.msra.mxu0 0.0
    %1825 = vmatprep.subr.mxu0 0.0
    %1826 = vmatpush2.msra.mxu0 0.0
    %1827 = vmatprep.subr.mxu0 0.0
    %1828 = vmatpush2.msra.mxu0 0.0
    %1829 = vmatprep.subr.mxu0 0.0
    %1830 = vmatpush2.msra.mxu0 0.0
    %1831 = vmatprep.subr.mxu0 0.0
    %1832 = vmatpush2.msra.mxu0 0.0
    %1833 = vmatprep.subr.mxu0 0.0
    %1834 = vmatpush2.msra.mxu0 0.0
    %1835 = vmatprep.subr.mxu0 0.0
    %1836 = vmatpush2.msra.mxu0 0.0
    %1837 = vmatprep.mubr.f32.mxu0 0.0
    %1838 = vmatmul.mubr.f32.gmra.mxu0 %v1771
    %v1839 = vpop.f32.mrf.mxu0
    %v1840 = vadd.f32 %v1691, %v1839
    %v1841 = vpop.f32.mrf.mxu0
    %1842 = vdwg.mxu0
    %v1843 = vadd.f32 %v1840, %v1768
    %1844 = vset.pattern.permute.xlu0 24
    %1845 = vperm.xlu0 %1844, %v1537
    %v1846 = vpop.permute.xlu0 %1845
    %v1848 = vadd.f32 %v1846, %v1843
    %vm1849 = vcmask 257024
    %1850 = vst.msk [vmem:[#allocation7] sm:$0xf] %vm1849, %v1848
    // Predicated region
    $region18: #{tpu_custom_call.1} parent=1 // pred_check
      _
    $region19: #{tpu_custom_call.1} parent=1 // pred_check_branch
      %1852 = sbr.rel (0) target = $region21
    $region20: #{tpu_custom_call.1} parent=1 // pred_region
      %s1854 = ssub.s32 64, 64
      %1855 = vsyncadd [#allocation4], %s1854
      %s1857 = sshll.u32 [#allocation7], 4
      %s1858 = int_to_ptr.vmem [resolvable:$true] %s1857
      %1860 = dma.vmem_to_hbm [thread:$0]  %s1858, 64, %s2, [#allocation4]
    $region21: #{tpu_custom_call.1} parent=1 // pred_fallthru
      _
    // Predicated region
    $region22: #{tpu_custom_call.1} parent=1 // pred_check
      _
    $region23: #{tpu_custom_call.1} parent=1 // pred_check_branch
      %1862 = sbr.rel (0) target = $region25
    $region24: #{tpu_custom_call.1} parent=1 // pred_region
      %1863 = dma.done [#allocation4], 64
    $region25: #{tpu_custom_call.1} parent=1 // pred_fallthru
      _
    %1864 = vsyncpa [#allocation3], 1
    %1865 = vsyncpa [#allocation6], 1
    %1866 = vsyncpa [#allocation4], 1

</llo_original>
